<compile_context>
chip_gen: v5e
topology: v5e:2x2
jax: 0.10.0
libtpu: 0.0.40
codegen_flags: <defaults>
</compile_context>

<pallas_src>
import functools

import jax
import jax.numpy as jnp
from jax import lax
from jax.experimental import pallas as pl
from jax.experimental.pallas import tpu as pltpu

F32 = jnp.float32
BF16 = jnp.bfloat16
LN_EPS = 1e-12          # matches the reference custom LayerNorm eps
MASK_FILL = -10000.0    # reference masked_fill(mask == 0, -10000)


# ----------------------------- hardware-derived knobs -----------------------------

@functools.lru_cache(maxsize=None)
def _vmem_limit_bytes():
    """~3/4 of this chip's physical VMEM (64 MiB on v7x, 128 MiB on v5e/v6e)."""
    try:
        cap = int(pltpu.get_tpu_info().vmem_capacity_bytes)
    except Exception:
        cap = 64 * 1024 * 1024
    return (cap * 3) // 4


def _probe_copy_kernel(x_ref, o_ref):
    o_ref[...] = x_ref[...] + 1.0


@functools.lru_cache(maxsize=None)
def _weight_pipeline_mode():
    """pl.Buffered(1) for replicated weight blocks if this build lowers it correctly.

    Weight BlockSpecs below use a constant index_map, so the default double buffer is pure VMEM
    waste; single-buffering halves resident weight VMEM at zero perf cost.  Probed eagerly (call
    once OUTSIDE jit) so an unsupported build falls back to default buffering instead of failing.
    """
    try:
        mode = pl.Buffered(1)
        x = jnp.arange(8 * 128, dtype=F32).reshape(8, 128)
        out = pl.pallas_call(
            _probe_copy_kernel,
            out_shape=jax.ShapeDtypeStruct((8, 128), F32),
            grid=(1,),
            in_specs=[pl.BlockSpec((8, 128), lambda i: (0, 0), pipeline_mode=mode)],
            out_specs=pl.BlockSpec((8, 128), lambda i: (0, 0)),
        )(x)
        if bool(jnp.allclose(jax.block_until_ready(out), x + 1.0)):
            return mode
    except Exception:
        pass
    return None


def _rep_spec(shape):
    """Full-extent block replicated (constant index_map) across the batch grid."""
    zeros = (0,) * len(shape)
    mode = _weight_pipeline_mode()
    if mode is not None:
        return pl.BlockSpec(shape, lambda b: zeros, pipeline_mode=mode)
    return pl.BlockSpec(shape, lambda b: zeros)


# ----------------------------- in-kernel helpers (trace-time) -----------------------------

def _add_layernorm(y, res, gamma, beta):
    """(y + res) -> LayerNorm, eps=1e-12, biased variance.  Kept in f32 (VPU/EUP path)."""
    z = y + res
    mu = jnp.mean(z, axis=-1, keepdims=True)
    var = jnp.mean((z - mu) ** 2, axis=-1, keepdims=True)
    return (z - mu) * lax.rsqrt(var + LN_EPS) * gamma + beta


def _mha_project(q, k, v, keep, wo_ref, bo, n_head, obuf_ref):
    """Multi-head attention + single merged output projection.

    q: [Lq, d] f32, k/v: [Lk, d] f32, keep: [Lq, Lk] bool (True = keep; compare hoisted out of
    the head loop), wo_ref: [d, d] bf16, bo: [1, d] f32, obuf_ref: [Lq, d] f32 VMEM scratch.
    Per-head outputs land in obuf_ref at their static slice, then ONE K=d matmul does the output
    projection (full MXU occupancy instead of n_head small K=dk matmuls).
    NOTE: for production configs keep dk a multiple of 128 so head slices stay lane-aligned.
    TODO(synk): for Lt/Ls >~ 1-2k, replace the dense [Lq, Lk] score buffer with a K/V-tiled
    online-softmax (flash-style) loop to bound VMEM.
    """
    d = q.shape[-1]
    dk = d // n_head
    scale = 1.0 / float(dk) ** 0.5
    for h in range(n_head):
        sl = slice(h * dk, (h + 1) * dk)
        qh = q[:, sl].astype(BF16)
        kh = k[:, sl].astype(BF16)
        vh = v[:, sl].astype(BF16)
        # qh @ kh^T on the MXU (bf16 in, f32 accumulate), no explicit transpose.
        s = lax.dot_general(qh, kh, (((1,), (1,)), ((), ())),
                            preferred_element_type=F32) * scale
        s = jnp.where(keep, s, MASK_FILL)                 # masked_fill(mask == 0, -10000)
        s = s - jnp.max(s, axis=-1, keepdims=True)
        p = jnp.exp(s)
        p = p * pl.reciprocal(jnp.sum(p, axis=-1, keepdims=True), approx=True)  # EUP slot
        obuf_ref[:, sl] = jnp.dot(p.astype(BF16), vh, preferred_element_type=F32)
    return jnp.dot(obuf_ref[...].astype(BF16), wo_ref[...],
                   preferred_element_type=F32) + bo


# ----------------------------- fused decoder-layer kernel -----------------------------

def _decoder_layer_kernel(x_ref, enc_ref, tmask_ref, smask_ref,
                          w_sqkv_ref, b_sqkv_ref, w_so_ref, b_so_ref,
                          w_cq_ref, b_cq_ref, w_ckv_ref, b_ckv_ref, w_co_ref, b_co_ref,
                          w_f1_ref, b_f1_ref, w_f2_ref, b_f2_ref,
                          ln_g_ref, ln_b_ref,
                          o_ref, obuf_ref, *, n_head):
    x = x_ref[0]                   # [Lt, d]  f32
    enc = enc_ref[0]               # [Ls, d]  bf16 (only ever an MXU operand)
    d = x.shape[-1]

    # Hoisted once per attention (not once per head): boolean keep-masks from int8 inputs.
    t_keep = tmask_ref[0] != 0     # [Lt, Lt]
    s_keep = smask_ref[0] != 0     # [Lt, Ls]

    ln_g = ln_g_ref[...]           # [3, d]
    ln_b = ln_b_ref[...]

    # 1) masked self-attention (fused bf16 QKV projection) + add & LayerNorm
    qkv = jnp.dot(x.astype(BF16), w_sqkv_ref[...],
                  preferred_element_type=F32) + b_sqkv_ref[...]
    q, k, v = qkv[:, :d], qkv[:, d:2 * d], qkv[:, 2 * d:]
    sa = _mha_project(q, k, v, t_keep, w_so_ref, b_so_ref[...], n_head, obuf_ref)
    x = _add_layernorm(sa, x, ln_g[0:1], ln_b[0:1])

    # 2) encoder-decoder cross-attention (fused bf16 K|V projection) + add & LayerNorm
    q = jnp.dot(x.astype(BF16), w_cq_ref[...],
                preferred_element_type=F32) + b_cq_ref[...]
    kv = jnp.dot(enc, w_ckv_ref[...], preferred_element_type=F32) + b_ckv_ref[...]
    k, v = kv[:, :d], kv[:, d:]
    ca = _mha_project(q, k, v, s_keep, w_co_ref, b_co_ref[...], n_head, obuf_ref)
    x = _add_layernorm(ca, x, ln_g[1:2], ln_b[1:2])

    # 3) position-wise FFN (bf16 matmuls) + add & LayerNorm
    # TODO(synk): on v7x at production d_model/ffn_hidden, tile the FFN weights (e.g. with
    # pltpu.emit_pipeline over ffn_hidden chunks) instead of keeping both fully VMEM-resident.
    h = jnp.dot(x.astype(BF16), w_f1_ref[...], preferred_element_type=F32) + b_f1_ref[...]
    h = jnp.maximum(h, 0.0)        # ReLU
    f = jnp.dot(h.astype(BF16), w_f2_ref[...], preferred_element_type=F32) + b_f2_ref[...]
    x = _add_layernorm(f, x, ln_g[2:3], ln_b[2:3])

    o_ref[0] = x


def decoder_layer(x, enc_bf16, cross_keep, trg_keep, lp, n_head):
    B, Lt, d = x.shape
    Ls = enc_bf16.shape[1]
    ffn_hidden = lp["ffn_w1"].shape[1]
    kern = functools.partial(_decoder_layer_kernel, n_head=n_head)

    # Advisory cost estimate (helps XLA schedule the chain of per-layer calls).
    flops = 2 * B * (Lt * d * 3 * d            # self-attn QKV
                     + 2 * Lt * Lt * d         # self scores + PV (all heads)
                     + Lt * d * d              # self out-proj
                     + Lt * d * d              # cross Q
                     + Ls * d * 2 * d          # cross K|V
                     + 2 * Lt * Ls * d         # cross scores + PV
                     + Lt * d * d              # cross out-proj
                     + 2 * Lt * d * ffn_hidden)   # FFN (both matmuls)
    weight_bytes = sum(int(a.size) * a.dtype.itemsize for a in lp.values())
    act_bytes = sum(int(a.size) * a.dtype.itemsize
                    for a in (x, enc_bf16, cross_keep, trg_keep))
    cost = pl.CostEstimate(flops=int(flops),
                           transcendentals=int(B * n_head * (Lt * Lt + Lt * Ls)),
                           bytes_accessed=int(weight_bytes + act_bytes + B * Lt * d * 4))

    return pl.pallas_call(
        kern,
        out_shape=jax.ShapeDtypeStruct((B, Lt, d), F32),
        grid=(B,),   # B >= 2 gives v7x's two TensorCores independent parallel steps
        in_specs=[
            pl.BlockSpec((1, Lt, d), lambda b: (b, 0, 0)),     # x (f32)
            pl.BlockSpec((1, Ls, d), lambda b: (b, 0, 0)),     # enc (bf16)
            pl.BlockSpec((1, Lt, Lt), lambda b: (b, 0, 0)),    # trg keep-mask (int8)
            pl.BlockSpec((1, Lt, Ls), lambda b: (b, 0, 0)),    # cross keep-mask (int8)
            _rep_spec((d, 3 * d)), _rep_spec((1, 3 * d)),      # self-attn QKV
            _rep_spec((d, d)), _rep_spec((1, d)),              # self-attn out proj
            _rep_spec((d, d)), _rep_spec((1, d)),              # cross-attn Q
            _rep_spec((d, 2 * d)), _rep_spec((1, 2 * d)),      # cross-attn K|V
            _rep_spec((d, d)), _rep_spec((1, d)),              # cross-attn out proj
            _rep_spec((d, ffn_hidden)), _rep_spec((1, ffn_hidden)),
            _rep_spec((ffn_hidden, d)), _rep_spec((1, d)),
            _rep_spec((3, d)), _rep_spec((3, d)),              # LayerNorm gammas / betas
        ],
        out_specs=pl.BlockSpec((1, Lt, d), lambda b: (b, 0, 0)),
        scratch_shapes=[pltpu.VMEM((Lt, d), F32)],             # head-concat attention buffer
        compiler_params=pltpu.CompilerParams(
            dimension_semantics=("parallel",),
            vmem_limit_bytes=_vmem_limit_bytes()),
        cost_estimate=cost,
    )(x, enc_bf16, trg_keep, cross_keep,
      lp["w_self_qkv"], lp["b_self_qkv"], lp["w_self_o"], lp["b_self_o"],
      lp["w_cross_q"], lp["b_cross_q"], lp["w_cross_kv"], lp["b_cross_kv"],
      lp["w_cross_o"], lp["b_cross_o"],
      lp["ffn_w1"], lp["ffn_b1"], lp["ffn_w2"], lp["ffn_b2"],
      lp["ln_g"], lp["ln_b"])


# ----------------------------- tiled vocab projection -----------------------------

def _linear_kernel(x_ref, w_ref, b_ref, o_ref):
    o_ref[...] = (jnp.dot(x_ref[...], w_ref[...],
                          preferred_element_type=F32) + b_ref[...])


def linear_tiled(x2d, w, b2d, *, tm, tn):
    """x2d: [n, d] bf16; w: [d, dout] bf16; b2d: [1, dout] f32 -> [n, dout] f32 logits.

    The vocab (weight) tile is on the OUTER grid axis so the big [d, V] weight is streamed from
    HBM exactly once; the cheap row blocks are re-streamed once per vocab tile.
    """
    n, d = x2d.shape
    dout = w.shape[1]
    return pl.pallas_call(
        _linear_kernel,
        out_shape=jax.ShapeDtypeStruct((n, dout), F32),
        grid=(pl.cdiv(dout, tn), pl.cdiv(n, tm)),
        in_specs=[
            pl.BlockSpec((tm, d), lambda j, i: (i, 0)),
            pl.BlockSpec((d, tn), lambda j, i: (0, j)),
            pl.BlockSpec((1, tn), lambda j, i: (0, j)),
        ],
        out_specs=pl.BlockSpec((tm, tn), lambda j, i: (i, j)),
        compiler_params=pltpu.CompilerParams(
            dimension_semantics=("parallel", "parallel"),
            vmem_limit_bytes=_vmem_limit_bytes()),
    )(x2d, w, b2d)


# ----------------------------- model glue -----------------------------

def sinusoidal_pos_encoding(max_len, d_model):
    pos = jnp.arange(max_len, dtype=F32)[:, None]
    i = jnp.arange(0, d_model, 2, dtype=F32)[None, :]
    angle = pos / jnp.power(10000.0, i / d_model)
    pe = jnp.zeros((max_len, d_model), F32)
    pe = pe.at[:, 0::2].set(jnp.sin(angle))
    pe = pe.at[:, 1::2].set(jnp.cos(angle))
    return pe


def decoder_forward(params, trg, enc_output, src_mask, trg_mask, n_head):
    """trg: [B, Lt] int32; enc_output: [B, Ls, d]; returns logits [B, Lt, V]."""
    B, Lt = trg.shape
    Ls = enc_output.shape[1]
    d = params["emb_table"].shape[1]

    # TODO(synk): embedding row-gather kept in XLA (irregular gather; a Pallas version would
    # need a manual DMA-gather kernel).
    tok = params["emb_table"][trg]
    x = tok + params["pos_enc"][:Lt][None, :, :]   # + sinusoidal PE; dropout = identity (eval)

    # Cross-attention needs a [B, Lt, Ls] mask.  src_mask is [B, Ls, Ls] per the module
    # docstring; when Lt == Ls it is used as-is (original semantics), otherwise the key-padding
    # row is broadcast over the Lt query positions.
    if src_mask.shape[1] == Lt:
        cross_mask = src_mask
    else:
        cross_mask = jnp.broadcast_to(src_mask[:, :1, :], (B, Lt, Ls))

    # int8 keep-masks: 4x less mask HBM traffic per layer than dense f32, and the (mask != 0)
    # compare is done once here instead of once per layer per head.
    trg_keep = (trg_mask != 0).astype(jnp.int8)
    cross_keep = (cross_mask != 0).astype(jnp.int8)

    # enc_output is only ever an MXU operand inside the layers -> ship it bf16 once.
    enc_bf16 = enc_output.astype(BF16)

    for lp in params["layers"]:
        x = decoder_layer(x, enc_bf16, cross_keep, trg_keep, lp, n_head)

    # Vocab projection: large row tiles and up to 512-wide vocab tiles so the [d, V] weight is
    # not re-streamed per tiny row block.
    n = B * Lt
    V = params["out_w"].shape[1]
    tm = 256 if n >= 256 else n
    tn = 512 if V >= 512 else V
    logits = linear_tiled(x.reshape(n, d).astype(BF16), params["out_w"], params["out_b"],
                          tm=tm, tn=tn)
    return logits.reshape(B, Lt, V)


# ----------------------------- parameter init -----------------------------

def init_params(key, dec_voc_size, max_len, d_model, ffn_hidden, n_layers):
    def w(k, shape, scale=0.02):
        # Matmul weights stored in bf16: v6e/v7x MXUs are bf16-native and it halves weight
        # DMA bytes / VMEM residency.  Biases / LN params stay f32 (added after f32 accumulation).
        return (scale * jax.random.normal(k, shape)).astype(BF16)

    keys = iter(jax.random.split(key, 4 + 16 * n_layers))
    emb = jax.random.normal(next(keys), (dec_voc_size, d_model)).astype(F32)
    emb = emb.at[1].set(0.0)   # nn.Embedding(padding_idx=1) zeroes row 1
    params = {
        "emb_table": emb,
        "pos_enc": sinusoidal_pos_encoding(max_len, d_model),
        "layers": [],
        "out_w": w(next(keys), (d_model, dec_voc_size)),
        "out_b": jnp.zeros((1, dec_voc_size), F32),
    }

    for _ in range(n_layers):
        params["layers"].append({
            # self-attention: packed QKV projection
            "w_self_qkv": w(next(keys), (d_model, 3 * d_model)),
            "b_self_qkv": jnp.zeros((1, 3 * d_model), F32),
            "w_self_o": w(next(keys), (d_model, d_model)),
            "b_self_o": jnp.zeros((1, d_model), F32),
            # cross-attention: Q from decoder, packed K|V from encoder output
            "w_cross_q": w(next(keys), (d_model, d_model)),
            "b_cross_q": jnp.zeros((1, d_model), F32),
            "w_cross_kv": w(next(keys), (d_model, 2 * d_model)),
            "b_cross_kv": jnp.zeros((1, 2 * d_model), F32),
            "w_cross_o": w(next(keys), (d_model, d_model)),
            "b_cross_o": jnp.zeros((1, d_model), F32),
            # position-wise FFN
            "ffn_w1": w(next(keys), (d_model, ffn_hidden)),
            "ffn_b1": jnp.zeros((1, ffn_hidden), F32),
            "ffn_w2": w(next(keys), (ffn_hidden, d_model)),
            "ffn_b2": jnp.zeros((1, d_model), F32),
            # LayerNorms: row 0 = norm1, 1 = norm2, 2 = norm3
            "ln_g": jnp.ones((3, d_model), F32),
            "ln_b": jnp.zeros((3, d_model), F32),
        })
    return params


# ----------------------------- demo -----------------------------

if __name__ == "__main__":
    # Small config consistent with the module's constructor arguments.
    dec_voc_size = 100
    max_len = 16
    d_model = 32
    ffn_hidden = 64
    n_head = 4        # demo dk=8; use dk=128-aligned heads for production configs
    n_layers = 2
    # drop_prob is irrelevant in eval mode (dropout = identity).

    B, Lt, Ls = 2, 8, 8

    key = jax.random.PRNGKey(0)
    k_par, k_trg, k_enc = jax.random.split(key, 3)

    params = init_params(k_par, dec_voc_size, max_len, d_model, ffn_hidden, n_layers)

    trg = jax.random.randint(k_trg, (B, Lt), 0, dec_voc_size, dtype=jnp.int32)
    enc_output = jax.random.normal(k_enc, (B, Ls, d_model), dtype=F32)

    # trg_mask: causal [B, Lt, Lt]; src_mask: all-ones [B, Ls, Ls] (per module docstring).
    trg_mask = jnp.tril(jnp.ones((Lt, Lt), F32))[None, :, :].repeat(B, axis=0)
    src_mask = jnp.ones((B, Ls, Ls), F32)

    # Probe hardware-derived knobs once, eagerly (outside jit).
    _weight_pipeline_mode()
    _vmem_limit_bytes()

    fwd = jax.jit(functools.partial(decoder_forward, n_head=n_head))
    logits = fwd(params, trg, enc_output, src_mask, trg_mask)
    logits = jax.block_until_ready(logits)

    assert logits.shape == (B, Lt, dec_voc_size)
    assert bool(jnp.all(jnp.isfinite(logits)))
    print("KERNEL_OK")
</pallas_src>

<mosaic_0001>
module attributes {stable_mosaic.version = 11 : i64} {
  func.func @_probe_copy_kernel(%arg0: i32, %arg1: memref<8x128xf32, #tpu.memory_space<vmem>>, %arg2: memref<8x128xf32, #tpu.memory_space<vmem>>) attributes {dimension_semantics = [#tpu.dimension_semantics<arbitrary>], iteration_bounds = array<i64: 1>, scalar_prefetch = 0 : i64, scratch_operands = 0 : i64, tpu.core_type = #tpu.core_type<tc>, window_params = [{pipeline_mode = #tpu.pipeline_mode<synchronous>, transform_indices = @transform_0, window_bounds = array<i64: 8, 128>}, {pipeline_mode = #tpu.pipeline_mode<synchronous>, transform_indices = @transform_1, window_bounds = array<i64: 8, 128>}]} {
    %c0 = arith.constant 0 : index
    %c0_0 = arith.constant 0 : index
    %0 = vector.load %arg1[%c0, %c0_0] : memref<8x128xf32, #tpu.memory_space<vmem>>, vector<8x128xf32>
    %cst = arith.constant 1.000000e+00 : f32
    %1 = vector.broadcast %cst : f32 to vector<8x128xf32>
    %2 = arith.addf %0, %1 : vector<8x128xf32>
    %c0_1 = arith.constant 0 : index
    %c0_2 = arith.constant 0 : index
    %3 = vector.load %arg2[%c0_1, %c0_2] : memref<8x128xf32, #tpu.memory_space<vmem>>, vector<8x128xf32>
    tpu.vector_store %arg2[%c0_1, %c0_2], %2 {strides = array<i32>} : memref<8x128xf32, #tpu.memory_space<vmem>>, vector<8x128xf32>,
    return
  }
  func.func @transform_0(%arg0: i32) -> (i32, i32) {
    %c0_i32 = arith.constant 0 : i32
    %c0_i32_0 = arith.constant 0 : i32
    %c0_i32_1 = arith.constant 0 : i32
    return %c0_i32, %c0_i32_0 : i32, i32
  }
  func.func @transform_1(%arg0: i32) -> (i32, i32) {
    %c0_i32 = arith.constant 0 : i32
    %c0_i32_0 = arith.constant 0 : i32
    %c0_i32_1 = arith.constant 0 : i32
    return %c0_i32, %c0_i32_0 : i32, i32
  }
}

module attributes {stable_mosaic.version = 11 : i64} {
  func.func @_decoder_layer_kernel(%arg0: i32, %arg1: memref<1x8x32xf32, #tpu.memory_space<vmem>>, %arg2: memref<1x8x32xbf16, #tpu.memory_space<vmem>>, %arg3: memref<1x8x8xi8, #tpu.memory_space<vmem>>, %arg4: memref<1x8x8xi8, #tpu.memory_space<vmem>>, %arg5: memref<32x96xbf16, #tpu.memory_space<vmem>>, %arg6: memref<1x96xf32, #tpu.memory_space<vmem>>, %arg7: memref<32x32xbf16, #tpu.memory_space<vmem>>, %arg8: memref<1x32xf32, #tpu.memory_space<vmem>>, %arg9: memref<32x32xbf16, #tpu.memory_space<vmem>>, %arg10: memref<1x32xf32, #tpu.memory_space<vmem>>, %arg11: memref<32x64xbf16, #tpu.memory_space<vmem>>, %arg12: memref<1x64xf32, #tpu.memory_space<vmem>>, %arg13: memref<32x32xbf16, #tpu.memory_space<vmem>>, %arg14: memref<1x32xf32, #tpu.memory_space<vmem>>, %arg15: memref<32x64xbf16, #tpu.memory_space<vmem>>, %arg16: memref<1x64xf32, #tpu.memory_space<vmem>>, %arg17: memref<64x32xbf16, #tpu.memory_space<vmem>>, %arg18: memref<1x32xf32, #tpu.memory_space<vmem>>, %arg19: memref<3x32xf32, #tpu.memory_space<vmem>>, %arg20: memref<3x32xf32, #tpu.memory_space<vmem>>, %arg21: memref<1x8x32xf32, #tpu.memory_space<vmem>>, %arg22: memref<8x32xf32, #tpu.memory_space<vmem>>) attributes {dimension_semantics = [#tpu.dimension_semantics<parallel>], iteration_bounds = array<i64: 2>, scalar_prefetch = 0 : i64, scratch_operands = 1 : i64, tpu.core_type = #tpu.core_type<tc>, window_params = [{transform_indices = @transform_0, window_bounds = array<i64: 1, 8, 32>}, {transform_indices = @transform_1, window_bounds = array<i64: 1, 8, 32>}, {transform_indices = @transform_2, window_bounds = array<i64: 1, 8, 8>}, {transform_indices = @transform_3, window_bounds = array<i64: 1, 8, 8>}, {pipeline_mode = #tpu.pipeline_mode<synchronous>, transform_indices = @transform_4, window_bounds = array<i64: 32, 96>}, {pipeline_mode = #tpu.pipeline_mode<synchronous>, transform_indices = @transform_5, window_bounds = array<i64: 1, 96>}, {pipeline_mode = #tpu.pipeline_mode<synchronous>, transform_indices = @transform_6, window_bounds = array<i64: 32, 32>}, {pipeline_mode = #tpu.pipeline_mode<synchronous>, transform_indices = @transform_7, window_bounds = array<i64: 1, 32>}, {pipeline_mode = #tpu.pipeline_mode<synchronous>, transform_indices = @transform_8, window_bounds = array<i64: 32, 32>}, {pipeline_mode = #tpu.pipeline_mode<synchronous>, transform_indices = @transform_9, window_bounds = array<i64: 1, 32>}, {pipeline_mode = #tpu.pipeline_mode<synchronous>, transform_indices = @transform_10, window_bounds = array<i64: 32, 64>}, {pipeline_mode = #tpu.pipeline_mode<synchronous>, transform_indices = @transform_11, window_bounds = array<i64: 1, 64>}, {pipeline_mode = #tpu.pipeline_mode<synchronous>, transform_indices = @transform_12, window_bounds = array<i64: 32, 32>}, {pipeline_mode = #tpu.pipeline_mode<synchronous>, transform_indices = @transform_13, window_bounds = array<i64: 1, 32>}, {pipeline_mode = #tpu.pipeline_mode<synchronous>, transform_indices = @transform_14, window_bounds = array<i64: 32, 64>}, {pipeline_mode = #tpu.pipeline_mode<synchronous>, transform_indices = @transform_15, window_bounds = array<i64: 1, 64>}, {pipeline_mode = #tpu.pipeline_mode<synchronous>, transform_indices = @transform_16, window_bounds = array<i64: 64, 32>}, {pipeline_mode = #tpu.pipeline_mode<synchronous>, transform_indices = @transform_17, window_bounds = array<i64: 1, 32>}, {pipeline_mode = #tpu.pipeline_mode<synchronous>, transform_indices = @transform_18, window_bounds = array<i64: 3, 32>}, {pipeline_mode = #tpu.pipeline_mode<synchronous>, transform_indices = @transform_19, window_bounds = array<i64: 3, 32>}, {transform_indices = @transform_20, window_bounds = array<i64: 1, 8, 32>}]} {
    %c0 = arith.constant 0 : index
    %c0_0 = arith.constant 0 : index
    %c0_1 = arith.constant 0 : index
    %0 = vector.load %arg1[%c0, %c0_0, %c0_1] : memref<1x8x32xf32, #tpu.memory_space<vmem>>, vector<1x8x32xf32>
    %1 = vector.shape_cast %0 : vector<1x8x32xf32> to vector<8x32xf32>
    %c0_2 = arith.constant 0 : index
    %c0_3 = arith.constant 0 : index
    %c0_4 = arith.constant 0 : index
    %2 = vector.load %arg2[%c0_2, %c0_3, %c0_4] : memref<1x8x32xbf16, #tpu.memory_space<vmem>>, vector<1x8x32xbf16>
    %3 = vector.shape_cast %2 : vector<1x8x32xbf16> to vector<8x32xbf16>
    %c0_5 = arith.constant 0 : index
    %c0_6 = arith.constant 0 : index
    %c0_7 = arith.constant 0 : index
    %4 = vector.load %arg3[%c0_5, %c0_6, %c0_7] : memref<1x8x8xi8, #tpu.memory_space<vmem>>, vector<1x8x8xi8>
    %5 = vector.shape_cast %4 : vector<1x8x8xi8> to vector<8x8xi8>
    %c0_i8 = arith.constant 0 : i8
    %6 = vector.broadcast %c0_i8 : i8 to vector<8x8xi8>
    %7 = arith.cmpi ne, %5, %6 : vector<8x8xi8>
    %c0_8 = arith.constant 0 : index
    %c0_9 = arith.constant 0 : index
    %c0_10 = arith.constant 0 : index
    %8 = vector.load %arg4[%c0_8, %c0_9, %c0_10] : memref<1x8x8xi8, #tpu.memory_space<vmem>>, vector<1x8x8xi8>
    %9 = vector.shape_cast %8 : vector<1x8x8xi8> to vector<8x8xi8>
    %c0_i8_11 = arith.constant 0 : i8
    %10 = vector.broadcast %c0_i8_11 : i8 to vector<8x8xi8>
    %11 = arith.cmpi ne, %9, %10 : vector<8x8xi8>
    %c0_12 = arith.constant 0 : index
    %c0_13 = arith.constant 0 : index
    %12 = vector.load %arg19[%c0_12, %c0_13] : memref<3x32xf32, #tpu.memory_space<vmem>>, vector<3x32xf32>
    %c0_14 = arith.constant 0 : index
    %c0_15 = arith.constant 0 : index
    %13 = vector.load %arg20[%c0_14, %c0_15] : memref<3x32xf32, #tpu.memory_space<vmem>>, vector<3x32xf32>
    %14 = arith.truncf %1 : vector<8x32xf32> to vector<8x32xbf16>
    %c0_16 = arith.constant 0 : index
    %c0_17 = arith.constant 0 : index
    %15 = vector.load %arg5[%c0_16, %c0_17] : memref<32x96xbf16, #tpu.memory_space<vmem>>, vector<32x96xbf16>
    %cst = arith.constant dense<0.000000e+00> : vector<8x96xf32>
    %16 = tpu.matmul %14, %15, %cst {dimension_numbers = #tpu.dot_dimension_numbers<[1], [0], [0], [1], [0, 0, 1, 1], [], []>} : vector<8x32xbf16>, vector<32x96xbf16>, vector<8x96xf32> -> vector<8x96xf32>
    %c0_18 = arith.constant 0 : index
    %c0_19 = arith.constant 0 : index
    %17 = vector.load %arg6[%c0_18, %c0_19] : memref<1x96xf32, #tpu.memory_space<vmem>>, vector<1x96xf32>
    %18 = vector.broadcast %17 : vector<1x96xf32> to vector<8x96xf32>
    %19 = arith.addf %16, %18 : vector<8x96xf32>
    %20 = vector.extract_strided_slice %19 {offsets = [0, 0], sizes = [8, 32], strides = [1, 1]} : vector<8x96xf32> to vector<8x32xf32>
    %21 = vector.extract_strided_slice %19 {offsets = [0, 32], sizes = [8, 32], strides = [1, 1]} : vector<8x96xf32> to vector<8x32xf32>
    %22 = vector.extract_strided_slice %19 {offsets = [0, 64], sizes = [8, 32], strides = [1, 1]} : vector<8x96xf32> to vector<8x32xf32>
    %c0_20 = arith.constant 0 : index
    %c0_21 = arith.constant 0 : index
    %23 = vector.load %arg8[%c0_20, %c0_21] : memref<1x32xf32, #tpu.memory_space<vmem>>, vector<1x32xf32>
    %24 = vector.extract_strided_slice %20 {offsets = [0, 0], sizes = [8, 8], strides = [1, 1]} : vector<8x32xf32> to vector<8x8xf32>
    %25 = arith.truncf %24 : vector<8x8xf32> to vector<8x8xbf16>
    %26 = vector.extract_strided_slice %21 {offsets = [0, 0], sizes = [8, 8], strides = [1, 1]} : vector<8x32xf32> to vector<8x8xf32>
    %27 = arith.truncf %26 : vector<8x8xf32> to vector<8x8xbf16>
    %28 = vector.extract_strided_slice %22 {offsets = [0, 0], sizes = [8, 8], strides = [1, 1]} : vector<8x32xf32> to vector<8x8xf32>
    %29 = arith.truncf %28 : vector<8x8xf32> to vector<8x8xbf16>
    %cst_22 = arith.constant dense<0.000000e+00> : vector<8x8xf32>
    %30 = tpu.matmul %25, %27, %cst_22 {dimension_numbers = #tpu.dot_dimension_numbers<[1], [1], [0], [0], [0, 0, 1, 0], [], []>} : vector<8x8xbf16>, vector<8x8xbf16>, vector<8x8xf32> -> vector<8x8xf32>
    %cst_23 = arith.constant 0.353553385 : f32
    %31 = vector.broadcast %cst_23 : f32 to vector<8x8xf32>
    %32 = arith.mulf %30, %31 : vector<8x8xf32>
    %cst_24 = arith.constant -1.000000e+04 : f32
    %33 = vector.broadcast %cst_24 : f32 to vector<8x8xf32>
    %34 = arith.select %7, %32, %33 : vector<8x8xi1>, vector<8x8xf32>
    %cst_25 = arith.constant dense<0xFF800000> : vector<8xf32>
    %35 = vector.multi_reduction <maximumf>, %34, %cst_25 [1] : vector<8x8xf32> to vector<8xf32>
    %36 = vector.shape_cast %35 : vector<8xf32> to vector<8x1xf32>
    %37 = vector.broadcast %36 : vector<8x1xf32> to vector<8x8xf32>
    %38 = arith.subf %34, %37 : vector<8x8xf32>
    %39 = math.exp %38 : vector<8x8xf32>
    %cst_26 = arith.constant dense<0.000000e+00> : vector<8xf32>
    %40 = vector.multi_reduction <add>, %39, %cst_26 [1] : vector<8x8xf32> to vector<8xf32>
    %41 = vector.shape_cast %40 : vector<8xf32> to vector<8x1xf32>
    %42 = tpu.reciprocal %41 {approx = true} : vector<8x1xf32> -> vector<8x1xf32>
    %43 = vector.broadcast %42 : vector<8x1xf32> to vector<8x8xf32>
    %44 = arith.mulf %39, %43 : vector<8x8xf32>
    %45 = arith.truncf %44 : vector<8x8xf32> to vector<8x8xbf16>
    %cst_27 = arith.constant dense<0.000000e+00> : vector<8x8xf32>
    %46 = tpu.matmul %45, %29, %cst_27 {dimension_numbers = #tpu.dot_dimension_numbers<[1], [0], [0], [1], [0, 0, 1, 1], [], []>} : vector<8x8xbf16>, vector<8x8xbf16>, vector<8x8xf32> -> vector<8x8xf32>
    %c0_28 = arith.constant 0 : index
    %c0_29 = arith.constant 0 : index
    %47 = vector.load %arg22[%c0_28, %c0_29] : memref<8x32xf32, #tpu.memory_space<vmem>>, vector<8x8xf32>
    tpu.vector_store %arg22[%c0_28, %c0_29], %46 {strides = array<i32>} : memref<8x32xf32, #tpu.memory_space<vmem>>, vector<8x8xf32>,
    %48 = vector.extract_strided_slice %20 {offsets = [0, 8], sizes = [8, 8], strides = [1, 1]} : vector<8x32xf32> to vector<8x8xf32>
    %49 = arith.truncf %48 : vector<8x8xf32> to vector<8x8xbf16>
    %50 = vector.extract_strided_slice %21 {offsets = [0, 8], sizes = [8, 8], strides = [1, 1]} : vector<8x32xf32> to vector<8x8xf32>
    %51 = arith.truncf %50 : vector<8x8xf32> to vector<8x8xbf16>
    %52 = vector.extract_strided_slice %22 {offsets = [0, 8], sizes = [8, 8], strides = [1, 1]} : vector<8x32xf32> to vector<8x8xf32>
    %53 = arith.truncf %52 : vector<8x8xf32> to vector<8x8xbf16>
    %cst_30 = arith.constant dense<0.000000e+00> : vector<8x8xf32>
    %54 = tpu.matmul %49, %51, %cst_30 {dimension_numbers = #tpu.dot_dimension_numbers<[1], [1], [0], [0], [0, 0, 1, 0], [], []>} : vector<8x8xbf16>, vector<8x8xbf16>, vector<8x8xf32> -> vector<8x8xf32>
    %cst_31 = arith.constant 0.353553385 : f32
    %55 = vector.broadcast %cst_31 : f32 to vector<8x8xf32>
    %56 = arith.mulf %54, %55 : vector<8x8xf32>
    %cst_32 = arith.constant -1.000000e+04 : f32
    %57 = vector.broadcast %cst_32 : f32 to vector<8x8xf32>
    %58 = arith.select %7, %56, %57 : vector<8x8xi1>, vector<8x8xf32>
    %cst_33 = arith.constant dense<0xFF800000> : vector<8xf32>
    %59 = vector.multi_reduction <maximumf>, %58, %cst_33 [1] : vector<8x8xf32> to vector<8xf32>
    %60 = vector.shape_cast %59 : vector<8xf32> to vector<8x1xf32>
    %61 = vector.broadcast %60 : vector<8x1xf32> to vector<8x8xf32>
    %62 = arith.subf %58, %61 : vector<8x8xf32>
    %63 = math.exp %62 : vector<8x8xf32>
    %cst_34 = arith.constant dense<0.000000e+00> : vector<8xf32>
    %64 = vector.multi_reduction <add>, %63, %cst_34 [1] : vector<8x8xf32> to vector<8xf32>
    %65 = vector.shape_cast %64 : vector<8xf32> to vector<8x1xf32>
    %66 = tpu.reciprocal %65 {approx = true} : vector<8x1xf32> -> vector<8x1xf32>
    %67 = vector.broadcast %66 : vector<8x1xf32> to vector<8x8xf32>
    %68 = arith.mulf %63, %67 : vector<8x8xf32>
    %69 = arith.truncf %68 : vector<8x8xf32> to vector<8x8xbf16>
    %cst_35 = arith.constant dense<0.000000e+00> : vector<8x8xf32>
    %70 = tpu.matmul %69, %53, %cst_35 {dimension_numbers = #tpu.dot_dimension_numbers<[1], [0], [0], [1], [0, 0, 1, 1], [], []>} : vector<8x8xbf16>, vector<8x8xbf16>, vector<8x8xf32> -> vector<8x8xf32>
    %c0_36 = arith.constant 0 : index
    %c8 = arith.constant 8 : index
    %71 = vector.load %arg22[%c0_36, %c8] : memref<8x32xf32, #tpu.memory_space<vmem>>, vector<8x8xf32>
    tpu.vector_store %arg22[%c0_36, %c8], %70 {strides = array<i32>} : memref<8x32xf32, #tpu.memory_space<vmem>>, vector<8x8xf32>,
    %72 = vector.extract_strided_slice %20 {offsets = [0, 16], sizes = [8, 8], strides = [1, 1]} : vector<8x32xf32> to vector<8x8xf32>
    %73 = arith.truncf %72 : vector<8x8xf32> to vector<8x8xbf16>
    %74 = vector.extract_strided_slice %21 {offsets = [0, 16], sizes = [8, 8], strides = [1, 1]} : vector<8x32xf32> to vector<8x8xf32>
    %75 = arith.truncf %74 : vector<8x8xf32> to vector<8x8xbf16>
    %76 = vector.extract_strided_slice %22 {offsets = [0, 16], sizes = [8, 8], strides = [1, 1]} : vector<8x32xf32> to vector<8x8xf32>
    %77 = arith.truncf %76 : vector<8x8xf32> to vector<8x8xbf16>
    %cst_37 = arith.constant dense<0.000000e+00> : vector<8x8xf32>
    %78 = tpu.matmul %73, %75, %cst_37 {dimension_numbers = #tpu.dot_dimension_numbers<[1], [1], [0], [0], [0, 0, 1, 0], [], []>} : vector<8x8xbf16>, vector<8x8xbf16>, vector<8x8xf32> -> vector<8x8xf32>
    %cst_38 = arith.constant 0.353553385 : f32
    %79 = vector.broadcast %cst_38 : f32 to vector<8x8xf32>
    %80 = arith.mulf %78, %79 : vector<8x8xf32>
    %cst_39 = arith.constant -1.000000e+04 : f32
    %81 = vector.broadcast %cst_39 : f32 to vector<8x8xf32>
    %82 = arith.select %7, %80, %81 : vector<8x8xi1>, vector<8x8xf32>
    %cst_40 = arith.constant dense<0xFF800000> : vector<8xf32>
    %83 = vector.multi_reduction <maximumf>, %82, %cst_40 [1] : vector<8x8xf32> to vector<8xf32>
    %84 = vector.shape_cast %83 : vector<8xf32> to vector<8x1xf32>
    %85 = vector.broadcast %84 : vector<8x1xf32> to vector<8x8xf32>
    %86 = arith.subf %82, %85 : vector<8x8xf32>
    %87 = math.exp %86 : vector<8x8xf32>
    %cst_41 = arith.constant dense<0.000000e+00> : vector<8xf32>
    %88 = vector.multi_reduction <add>, %87, %cst_41 [1] : vector<8x8xf32> to vector<8xf32>
    %89 = vector.shape_cast %88 : vector<8xf32> to vector<8x1xf32>
    %90 = tpu.reciprocal %89 {approx = true} : vector<8x1xf32> -> vector<8x1xf32>
    %91 = vector.broadcast %90 : vector<8x1xf32> to vector<8x8xf32>
    %92 = arith.mulf %87, %91 : vector<8x8xf32>
    %93 = arith.truncf %92 : vector<8x8xf32> to vector<8x8xbf16>
    %cst_42 = arith.constant dense<0.000000e+00> : vector<8x8xf32>
    %94 = tpu.matmul %93, %77, %cst_42 {dimension_numbers = #tpu.dot_dimension_numbers<[1], [0], [0], [1], [0, 0, 1, 1], [], []>} : vector<8x8xbf16>, vector<8x8xbf16>, vector<8x8xf32> -> vector<8x8xf32>
    %c0_43 = arith.constant 0 : index
    %c16 = arith.constant 16 : index
    %95 = vector.load %arg22[%c0_43, %c16] : memref<8x32xf32, #tpu.memory_space<vmem>>, vector<8x8xf32>
    tpu.vector_store %arg22[%c0_43, %c16], %94 {strides = array<i32>} : memref<8x32xf32, #tpu.memory_space<vmem>>, vector<8x8xf32>,
    %96 = vector.extract_strided_slice %20 {offsets = [0, 24], sizes = [8, 8], strides = [1, 1]} : vector<8x32xf32> to vector<8x8xf32>
    %97 = arith.truncf %96 : vector<8x8xf32> to vector<8x8xbf16>
    %98 = vector.extract_strided_slice %21 {offsets = [0, 24], sizes = [8, 8], strides = [1, 1]} : vector<8x32xf32> to vector<8x8xf32>
    %99 = arith.truncf %98 : vector<8x8xf32> to vector<8x8xbf16>
    %100 = vector.extract_strided_slice %22 {offsets = [0, 24], sizes = [8, 8], strides = [1, 1]} : vector<8x32xf32> to vector<8x8xf32>
    %101 = arith.truncf %100 : vector<8x8xf32> to vector<8x8xbf16>
    %cst_44 = arith.constant dense<0.000000e+00> : vector<8x8xf32>
    %102 = tpu.matmul %97, %99, %cst_44 {dimension_numbers = #tpu.dot_dimension_numbers<[1], [1], [0], [0], [0, 0, 1, 0], [], []>} : vector<8x8xbf16>, vector<8x8xbf16>, vector<8x8xf32> -> vector<8x8xf32>
    %cst_45 = arith.constant 0.353553385 : f32
    %103 = vector.broadcast %cst_45 : f32 to vector<8x8xf32>
    %104 = arith.mulf %102, %103 : vector<8x8xf32>
    %cst_46 = arith.constant -1.000000e+04 : f32
    %105 = vector.broadcast %cst_46 : f32 to vector<8x8xf32>
    %106 = arith.select %7, %104, %105 : vector<8x8xi1>, vector<8x8xf32>
    %cst_47 = arith.constant dense<0xFF800000> : vector<8xf32>
    %107 = vector.multi_reduction <maximumf>, %106, %cst_47 [1] : vector<8x8xf32> to vector<8xf32>
    %108 = vector.shape_cast %107 : vector<8xf32> to vector<8x1xf32>
    %109 = vector.broadcast %108 : vector<8x1xf32> to vector<8x8xf32>
    %110 = arith.subf %106, %109 : vector<8x8xf32>
    %111 = math.exp %110 : vector<8x8xf32>
    %cst_48 = arith.constant dense<0.000000e+00> : vector<8xf32>
    %112 = vector.multi_reduction <add>, %111, %cst_48 [1] : vector<8x8xf32> to vector<8xf32>
    %113 = vector.shape_cast %112 : vector<8xf32> to vector<8x1xf32>
    %114 = tpu.reciprocal %113 {approx = true} : vector<8x1xf32> -> vector<8x1xf32>
    %115 = vector.broadcast %114 : vector<8x1xf32> to vector<8x8xf32>
    %116 = arith.mulf %111, %115 : vector<8x8xf32>
    %117 = arith.truncf %116 : vector<8x8xf32> to vector<8x8xbf16>
    %cst_49 = arith.constant dense<0.000000e+00> : vector<8x8xf32>
    %118 = tpu.matmul %117, %101, %cst_49 {dimension_numbers = #tpu.dot_dimension_numbers<[1], [0], [0], [1], [0, 0, 1, 1], [], []>} : vector<8x8xbf16>, vector<8x8xbf16>, vector<8x8xf32> -> vector<8x8xf32>
    %c0_50 = arith.constant 0 : index
    %c24 = arith.constant 24 : index
    %119 = vector.load %arg22[%c0_50, %c24] : memref<8x32xf32, #tpu.memory_space<vmem>>, vector<8x8xf32>
    tpu.vector_store %arg22[%c0_50, %c24], %118 {strides = array<i32>} : memref<8x32xf32, #tpu.memory_space<vmem>>, vector<8x8xf32>,
    %c0_51 = arith.constant 0 : index
    %c0_52 = arith.constant 0 : index
    %120 = vector.load %arg22[%c0_51, %c0_52] : memref<8x32xf32, #tpu.memory_space<vmem>>, vector<8x32xf32>
    %121 = arith.truncf %120 : vector<8x32xf32> to vector<8x32xbf16>
    %c0_53 = arith.constant 0 : index
    %c0_54 = arith.constant 0 : index
    %122 = vector.load %arg7[%c0_53, %c0_54] : memref<32x32xbf16, #tpu.memory_space<vmem>>, vector<32x32xbf16>
    %cst_55 = arith.constant dense<0.000000e+00> : vector<8x32xf32>
    %123 = tpu.matmul %121, %122, %cst_55 {dimension_numbers = #tpu.dot_dimension_numbers<[1], [0], [0], [1], [0, 0, 1, 1], [], []>} : vector<8x32xbf16>, vector<32x32xbf16>, vector<8x32xf32> -> vector<8x32xf32>
    %124 = vector.broadcast %23 : vector<1x32xf32> to vector<8x32xf32>
    %125 = arith.addf %123, %124 : vector<8x32xf32>
    %126 = vector.extract_strided_slice %12 {offsets = [0, 0], sizes = [1, 32], strides = [1, 1]} : vector<3x32xf32> to vector<1x32xf32>
    %127 = vector.extract_strided_slice %13 {offsets = [0, 0], sizes = [1, 32], strides = [1, 1]} : vector<3x32xf32> to vector<1x32xf32>
    %128 = arith.addf %125, %1 : vector<8x32xf32>
    %cst_56 = arith.constant dense<0.000000e+00> : vector<8xf32>
    %129 = vector.multi_reduction <add>, %128, %cst_56 [1] : vector<8x32xf32> to vector<8xf32>
    %130 = vector.shape_cast %129 : vector<8xf32> to vector<8x1xf32>
    %cst_57 = arith.constant 3.200000e+01 : f32
    %131 = vector.broadcast %cst_57 : f32 to vector<8x1xf32>
    %132 = arith.divf %130, %131 : vector<8x1xf32>
    %133 = vector.broadcast %132 : vector<8x1xf32> to vector<8x32xf32>
    %134 = arith.subf %128, %133 : vector<8x32xf32>
    %135 = arith.mulf %134, %134 : vector<8x32xf32>
    %cst_58 = arith.constant dense<0.000000e+00> : vector<8xf32>
    %136 = vector.multi_reduction <add>, %135, %cst_58 [1] : vector<8x32xf32> to vector<8xf32>
    %137 = vector.shape_cast %136 : vector<8xf32> to vector<8x1xf32>
    %cst_59 = arith.constant 3.200000e+01 : f32
    %138 = vector.broadcast %cst_59 : f32 to vector<8x1xf32>
    %139 = arith.divf %137, %138 : vector<8x1xf32>
    %140 = vector.broadcast %132 : vector<8x1xf32> to vector<8x32xf32>
    %141 = arith.subf %128, %140 : vector<8x32xf32>
    %cst_60 = arith.constant 9.99999996E-13 : f32
    %142 = vector.broadcast %cst_60 : f32 to vector<8x1xf32>
    %143 = arith.addf %139, %142 : vector<8x1xf32>
    %144 = math.rsqrt %143 : vector<8x1xf32>
    %145 = vector.broadcast %144 : vector<8x1xf32> to vector<8x32xf32>
    %146 = arith.mulf %141, %145 : vector<8x32xf32>
    %147 = vector.broadcast %126 : vector<1x32xf32> to vector<8x32xf32>
    %148 = arith.mulf %146, %147 : vector<8x32xf32>
    %149 = vector.broadcast %127 : vector<1x32xf32> to vector<8x32xf32>
    %150 = arith.addf %148, %149 : vector<8x32xf32>
    %151 = arith.truncf %150 : vector<8x32xf32> to vector<8x32xbf16>
    %c0_61 = arith.constant 0 : index
    %c0_62 = arith.constant 0 : index
    %152 = vector.load %arg9[%c0_61, %c0_62] : memref<32x32xbf16, #tpu.memory_space<vmem>>, vector<32x32xbf16>
    %cst_63 = arith.constant dense<0.000000e+00> : vector<8x32xf32>
    %153 = tpu.matmul %151, %152, %cst_63 {dimension_numbers = #tpu.dot_dimension_numbers<[1], [0], [0], [1], [0, 0, 1, 1], [], []>} : vector<8x32xbf16>, vector<32x32xbf16>, vector<8x32xf32> -> vector<8x32xf32>
    %c0_64 = arith.constant 0 : index
    %c0_65 = arith.constant 0 : index
    %154 = vector.load %arg10[%c0_64, %c0_65] : memref<1x32xf32, #tpu.memory_space<vmem>>, vector<1x32xf32>
    %155 = vector.broadcast %154 : vector<1x32xf32> to vector<8x32xf32>
    %156 = arith.addf %153, %155 : vector<8x32xf32>
    %c0_66 = arith.constant 0 : index
    %c0_67 = arith.constant 0 : index
    %157 = vector.load %arg11[%c0_66, %c0_67] : memref<32x64xbf16, #tpu.memory_space<vmem>>, vector<32x64xbf16>
    %cst_68 = arith.constant dense<0.000000e+00> : vector<8x64xf32>
    %158 = tpu.matmul %3, %157, %cst_68 {dimension_numbers = #tpu.dot_dimension_numbers<[1], [0], [0], [1], [0, 0, 1, 1], [], []>} : vector<8x32xbf16>, vector<32x64xbf16>, vector<8x64xf32> -> vector<8x64xf32>
    %c0_69 = arith.constant 0 : index
    %c0_70 = arith.constant 0 : index
    %159 = vector.load %arg12[%c0_69, %c0_70] : memref<1x64xf32, #tpu.memory_space<vmem>>, vector<1x64xf32>
    %160 = vector.broadcast %159 : vector<1x64xf32> to vector<8x64xf32>
    %161 = arith.addf %158, %160 : vector<8x64xf32>
    %162 = vector.extract_strided_slice %161 {offsets = [0, 0], sizes = [8, 32], strides = [1, 1]} : vector<8x64xf32> to vector<8x32xf32>
    %163 = vector.extract_strided_slice %161 {offsets = [0, 32], sizes = [8, 32], strides = [1, 1]} : vector<8x64xf32> to vector<8x32xf32>
    %c0_71 = arith.constant 0 : index
    %c0_72 = arith.constant 0 : index
    %164 = vector.load %arg14[%c0_71, %c0_72] : memref<1x32xf32, #tpu.memory_space<vmem>>, vector<1x32xf32>
    %165 = vector.extract_strided_slice %156 {offsets = [0, 0], sizes = [8, 8], strides = [1, 1]} : vector<8x32xf32> to vector<8x8xf32>
    %166 = arith.truncf %165 : vector<8x8xf32> to vector<8x8xbf16>
    %167 = vector.extract_strided_slice %162 {offsets = [0, 0], sizes = [8, 8], strides = [1, 1]} : vector<8x32xf32> to vector<8x8xf32>
    %168 = arith.truncf %167 : vector<8x8xf32> to vector<8x8xbf16>
    %169 = vector.extract_strided_slice %163 {offsets = [0, 0], sizes = [8, 8], strides = [1, 1]} : vector<8x32xf32> to vector<8x8xf32>
    %170 = arith.truncf %169 : vector<8x8xf32> to vector<8x8xbf16>
    %cst_73 = arith.constant dense<0.000000e+00> : vector<8x8xf32>
    %171 = tpu.matmul %166, %168, %cst_73 {dimension_numbers = #tpu.dot_dimension_numbers<[1], [1], [0], [0], [0, 0, 1, 0], [], []>} : vector<8x8xbf16>, vector<8x8xbf16>, vector<8x8xf32> -> vector<8x8xf32>
    %cst_74 = arith.constant 0.353553385 : f32
    %172 = vector.broadcast %cst_74 : f32 to vector<8x8xf32>
    %173 = arith.mulf %171, %172 : vector<8x8xf32>
    %cst_75 = arith.constant -1.000000e+04 : f32
    %174 = vector.broadcast %cst_75 : f32 to vector<8x8xf32>
    %175 = arith.select %11, %173, %174 : vector<8x8xi1>, vector<8x8xf32>
    %cst_76 = arith.constant dense<0xFF800000> : vector<8xf32>
    %176 = vector.multi_reduction <maximumf>, %175, %cst_76 [1] : vector<8x8xf32> to vector<8xf32>
    %177 = vector.shape_cast %176 : vector<8xf32> to vector<8x1xf32>
    %178 = vector.broadcast %177 : vector<8x1xf32> to vector<8x8xf32>
    %179 = arith.subf %175, %178 : vector<8x8xf32>
    %180 = math.exp %179 : vector<8x8xf32>
    %cst_77 = arith.constant dense<0.000000e+00> : vector<8xf32>
    %181 = vector.multi_reduction <add>, %180, %cst_77 [1] : vector<8x8xf32> to vector<8xf32>
    %182 = vector.shape_cast %181 : vector<8xf32> to vector<8x1xf32>
    %183 = tpu.reciprocal %182 {approx = true} : vector<8x1xf32> -> vector<8x1xf32>
    %184 = vector.broadcast %183 : vector<8x1xf32> to vector<8x8xf32>
    %185 = arith.mulf %180, %184 : vector<8x8xf32>
    %186 = arith.truncf %185 : vector<8x8xf32> to vector<8x8xbf16>
    %cst_78 = arith.constant dense<0.000000e+00> : vector<8x8xf32>
    %187 = tpu.matmul %186, %170, %cst_78 {dimension_numbers = #tpu.dot_dimension_numbers<[1], [0], [0], [1], [0, 0, 1, 1], [], []>} : vector<8x8xbf16>, vector<8x8xbf16>, vector<8x8xf32> -> vector<8x8xf32>
    %c0_79 = arith.constant 0 : index
    %c0_80 = arith.constant 0 : index
    %188 = vector.load %arg22[%c0_79, %c0_80] : memref<8x32xf32, #tpu.memory_space<vmem>>, vector<8x8xf32>
    tpu.vector_store %arg22[%c0_79, %c0_80], %187 {strides = array<i32>} : memref<8x32xf32, #tpu.memory_space<vmem>>, vector<8x8xf32>,
    %189 = vector.extract_strided_slice %156 {offsets = [0, 8], sizes = [8, 8], strides = [1, 1]} : vector<8x32xf32> to vector<8x8xf32>
    %190 = arith.truncf %189 : vector<8x8xf32> to vector<8x8xbf16>
    %191 = vector.extract_strided_slice %162 {offsets = [0, 8], sizes = [8, 8], strides = [1, 1]} : vector<8x32xf32> to vector<8x8xf32>
    %192 = arith.truncf %191 : vector<8x8xf32> to vector<8x8xbf16>
    %193 = vector.extract_strided_slice %163 {offsets = [0, 8], sizes = [8, 8], strides = [1, 1]} : vector<8x32xf32> to vector<8x8xf32>
    %194 = arith.truncf %193 : vector<8x8xf32> to vector<8x8xbf16>
    %cst_81 = arith.constant dense<0.000000e+00> : vector<8x8xf32>
    %195 = tpu.matmul %190, %192, %cst_81 {dimension_numbers = #tpu.dot_dimension_numbers<[1], [1], [0], [0], [0, 0, 1, 0], [], []>} : vector<8x8xbf16>, vector<8x8xbf16>, vector<8x8xf32> -> vector<8x8xf32>
    %cst_82 = arith.constant 0.353553385 : f32
    %196 = vector.broadcast %cst_82 : f32 to vector<8x8xf32>
    %197 = arith.mulf %195, %196 : vector<8x8xf32>
    %cst_83 = arith.constant -1.000000e+04 : f32
    %198 = vector.broadcast %cst_83 : f32 to vector<8x8xf32>
    %199 = arith.select %11, %197, %198 : vector<8x8xi1>, vector<8x8xf32>
    %cst_84 = arith.constant dense<0xFF800000> : vector<8xf32>
    %200 = vector.multi_reduction <maximumf>, %199, %cst_84 [1] : vector<8x8xf32> to vector<8xf32>
    %201 = vector.shape_cast %200 : vector<8xf32> to vector<8x1xf32>
    %202 = vector.broadcast %201 : vector<8x1xf32> to vector<8x8xf32>
    %203 = arith.subf %199, %202 : vector<8x8xf32>
    %204 = math.exp %203 : vector<8x8xf32>
    %cst_85 = arith.constant dense<0.000000e+00> : vector<8xf32>
    %205 = vector.multi_reduction <add>, %204, %cst_85 [1] : vector<8x8xf32> to vector<8xf32>
    %206 = vector.shape_cast %205 : vector<8xf32> to vector<8x1xf32>
    %207 = tpu.reciprocal %206 {approx = true} : vector<8x1xf32> -> vector<8x1xf32>
    %208 = vector.broadcast %207 : vector<8x1xf32> to vector<8x8xf32>
    %209 = arith.mulf %204, %208 : vector<8x8xf32>
    %210 = arith.truncf %209 : vector<8x8xf32> to vector<8x8xbf16>
    %cst_86 = arith.constant dense<0.000000e+00> : vector<8x8xf32>
    %211 = tpu.matmul %210, %194, %cst_86 {dimension_numbers = #tpu.dot_dimension_numbers<[1], [0], [0], [1], [0, 0, 1, 1], [], []>} : vector<8x8xbf16>, vector<8x8xbf16>, vector<8x8xf32> -> vector<8x8xf32>
    %c0_87 = arith.constant 0 : index
    %c8_88 = arith.constant 8 : index
    %212 = vector.load %arg22[%c0_87, %c8_88] : memref<8x32xf32, #tpu.memory_space<vmem>>, vector<8x8xf32>
    tpu.vector_store %arg22[%c0_87, %c8_88], %211 {strides = array<i32>} : memref<8x32xf32, #tpu.memory_space<vmem>>, vector<8x8xf32>,
    %213 = vector.extract_strided_slice %156 {offsets = [0, 16], sizes = [8, 8], strides = [1, 1]} : vector<8x32xf32> to vector<8x8xf32>
    %214 = arith.truncf %213 : vector<8x8xf32> to vector<8x8xbf16>
    %215 = vector.extract_strided_slice %162 {offsets = [0, 16], sizes = [8, 8], strides = [1, 1]} : vector<8x32xf32> to vector<8x8xf32>
    %216 = arith.truncf %215 : vector<8x8xf32> to vector<8x8xbf16>
    %217 = vector.extract_strided_slice %163 {offsets = [0, 16], sizes = [8, 8], strides = [1, 1]} : vector<8x32xf32> to vector<8x8xf32>
    %218 = arith.truncf %217 : vector<8x8xf32> to vector<8x8xbf16>
    %cst_89 = arith.constant dense<0.000000e+00> : vector<8x8xf32>
    %219 = tpu.matmul %214, %216, %cst_89 {dimension_numbers = #tpu.dot_dimension_numbers<[1], [1], [0], [0], [0, 0, 1, 0], [], []>} : vector<8x8xbf16>, vector<8x8xbf16>, vector<8x8xf32> -> vector<8x8xf32>
    %cst_90 = arith.constant 0.353553385 : f32
    %220 = vector.broadcast %cst_90 : f32 to vector<8x8xf32>
    %221 = arith.mulf %219, %220 : vector<8x8xf32>
    %cst_91 = arith.constant -1.000000e+04 : f32
    %222 = vector.broadcast %cst_91 : f32 to vector<8x8xf32>
    %223 = arith.select %11, %221, %222 : vector<8x8xi1>, vector<8x8xf32>
    %cst_92 = arith.constant dense<0xFF800000> : vector<8xf32>
    %224 = vector.multi_reduction <maximumf>, %223, %cst_92 [1] : vector<8x8xf32> to vector<8xf32>
    %225 = vector.shape_cast %224 : vector<8xf32> to vector<8x1xf32>
    %226 = vector.broadcast %225 : vector<8x1xf32> to vector<8x8xf32>
    %227 = arith.subf %223, %226 : vector<8x8xf32>
    %228 = math.exp %227 : vector<8x8xf32>
    %cst_93 = arith.constant dense<0.000000e+00> : vector<8xf32>
    %229 = vector.multi_reduction <add>, %228, %cst_93 [1] : vector<8x8xf32> to vector<8xf32>
    %230 = vector.shape_cast %229 : vector<8xf32> to vector<8x1xf32>
    %231 = tpu.reciprocal %230 {approx = true} : vector<8x1xf32> -> vector<8x1xf32>
    %232 = vector.broadcast %231 : vector<8x1xf32> to vector<8x8xf32>
    %233 = arith.mulf %228, %232 : vector<8x8xf32>
    %234 = arith.truncf %233 : vector<8x8xf32> to vector<8x8xbf16>
    %cst_94 = arith.constant dense<0.000000e+00> : vector<8x8xf32>
    %235 = tpu.matmul %234, %218, %cst_94 {dimension_numbers = #tpu.dot_dimension_numbers<[1], [0], [0], [1], [0, 0, 1, 1], [], []>} : vector<8x8xbf16>, vector<8x8xbf16>, vector<8x8xf32> -> vector<8x8xf32>
    %c0_95 = arith.constant 0 : index
    %c16_96 = arith.constant 16 : index
    %236 = vector.load %arg22[%c0_95, %c16_96] : memref<8x32xf32, #tpu.memory_space<vmem>>, vector<8x8xf32>
    tpu.vector_store %arg22[%c0_95, %c16_96], %235 {strides = array<i32>} : memref<8x32xf32, #tpu.memory_space<vmem>>, vector<8x8xf32>,
    %237 = vector.extract_strided_slice %156 {offsets = [0, 24], sizes = [8, 8], strides = [1, 1]} : vector<8x32xf32> to vector<8x8xf32>
    %238 = arith.truncf %237 : vector<8x8xf32> to vector<8x8xbf16>
    %239 = vector.extract_strided_slice %162 {offsets = [0, 24], sizes = [8, 8], strides = [1, 1]} : vector<8x32xf32> to vector<8x8xf32>
    %240 = arith.truncf %239 : vector<8x8xf32> to vector<8x8xbf16>
    %241 = vector.extract_strided_slice %163 {offsets = [0, 24], sizes = [8, 8], strides = [1, 1]} : vector<8x32xf32> to vector<8x8xf32>
    %242 = arith.truncf %241 : vector<8x8xf32> to vector<8x8xbf16>
    %cst_97 = arith.constant dense<0.000000e+00> : vector<8x8xf32>
    %243 = tpu.matmul %238, %240, %cst_97 {dimension_numbers = #tpu.dot_dimension_numbers<[1], [1], [0], [0], [0, 0, 1, 0], [], []>} : vector<8x8xbf16>, vector<8x8xbf16>, vector<8x8xf32> -> vector<8x8xf32>
    %cst_98 = arith.constant 0.353553385 : f32
    %244 = vector.broadcast %cst_98 : f32 to vector<8x8xf32>
    %245 = arith.mulf %243, %244 : vector<8x8xf32>
    %cst_99 = arith.constant -1.000000e+04 : f32
    %246 = vector.broadcast %cst_99 : f32 to vector<8x8xf32>
    %247 = arith.select %11, %245, %246 : vector<8x8xi1>, vector<8x8xf32>
    %cst_100 = arith.constant dense<0xFF800000> : vector<8xf32>
    %248 = vector.multi_reduction <maximumf>, %247, %cst_100 [1] : vector<8x8xf32> to vector<8xf32>
    %249 = vector.shape_cast %248 : vector<8xf32> to vector<8x1xf32>
    %250 = vector.broadcast %249 : vector<8x1xf32> to vector<8x8xf32>
    %251 = arith.subf %247, %250 : vector<8x8xf32>
    %252 = math.exp %251 : vector<8x8xf32>
    %cst_101 = arith.constant dense<0.000000e+00> : vector<8xf32>
    %253 = vector.multi_reduction <add>, %252, %cst_101 [1] : vector<8x8xf32> to vector<8xf32>
    %254 = vector.shape_cast %253 : vector<8xf32> to vector<8x1xf32>
    %255 = tpu.reciprocal %254 {approx = true} : vector<8x1xf32> -> vector<8x1xf32>
    %256 = vector.broadcast %255 : vector<8x1xf32> to vector<8x8xf32>
    %257 = arith.mulf %252, %256 : vector<8x8xf32>
    %258 = arith.truncf %257 : vector<8x8xf32> to vector<8x8xbf16>
    %cst_102 = arith.constant dense<0.000000e+00> : vector<8x8xf32>
    %259 = tpu.matmul %258, %242, %cst_102 {dimension_numbers = #tpu.dot_dimension_numbers<[1], [0], [0], [1], [0, 0, 1, 1], [], []>} : vector<8x8xbf16>, vector<8x8xbf16>, vector<8x8xf32> -> vector<8x8xf32>
    %c0_103 = arith.constant 0 : index
    %c24_104 = arith.constant 24 : index
    %260 = vector.load %arg22[%c0_103, %c24_104] : memref<8x32xf32, #tpu.memory_space<vmem>>, vector<8x8xf32>
    tpu.vector_store %arg22[%c0_103, %c24_104], %259 {strides = array<i32>} : memref<8x32xf32, #tpu.memory_space<vmem>>, vector<8x8xf32>,
    %c0_105 = arith.constant 0 : index
    %c0_106 = arith.constant 0 : index
    %261 = vector.load %arg22[%c0_105, %c0_106] : memref<8x32xf32, #tpu.memory_space<vmem>>, vector<8x32xf32>
    %262 = arith.truncf %261 : vector<8x32xf32> to vector<8x32xbf16>
    %c0_107 = arith.constant 0 : index
    %c0_108 = arith.constant 0 : index
    %263 = vector.load %arg13[%c0_107, %c0_108] : memref<32x32xbf16, #tpu.memory_space<vmem>>, vector<32x32xbf16>
    %cst_109 = arith.constant dense<0.000000e+00> : vector<8x32xf32>
    %264 = tpu.matmul %262, %263, %cst_109 {dimension_numbers = #tpu.dot_dimension_numbers<[1], [0], [0], [1], [0, 0, 1, 1], [], []>} : vector<8x32xbf16>, vector<32x32xbf16>, vector<8x32xf32> -> vector<8x32xf32>
    %265 = vector.broadcast %164 : vector<1x32xf32> to vector<8x32xf32>
    %266 = arith.addf %264, %265 : vector<8x32xf32>
    %267 = vector.extract_strided_slice %12 {offsets = [1, 0], sizes = [1, 32], strides = [1, 1]} : vector<3x32xf32> to vector<1x32xf32>
    %268 = vector.extract_strided_slice %13 {offsets = [1, 0], sizes = [1, 32], strides = [1, 1]} : vector<3x32xf32> to vector<1x32xf32>
    %269 = arith.addf %266, %150 : vector<8x32xf32>
    %cst_110 = arith.constant dense<0.000000e+00> : vector<8xf32>
    %270 = vector.multi_reduction <add>, %269, %cst_110 [1] : vector<8x32xf32> to vector<8xf32>
    %271 = vector.shape_cast %270 : vector<8xf32> to vector<8x1xf32>
    %cst_111 = arith.constant 3.200000e+01 : f32
    %272 = vector.broadcast %cst_111 : f32 to vector<8x1xf32>
    %273 = arith.divf %271, %272 : vector<8x1xf32>
    %274 = vector.broadcast %273 : vector<8x1xf32> to vector<8x32xf32>
    %275 = arith.subf %269, %274 : vector<8x32xf32>
    %276 = arith.mulf %275, %275 : vector<8x32xf32>
    %cst_112 = arith.constant dense<0.000000e+00> : vector<8xf32>
    %277 = vector.multi_reduction <add>, %276, %cst_112 [1] : vector<8x32xf32> to vector<8xf32>
    %278 = vector.shape_cast %277 : vector<8xf32> to vector<8x1xf32>
    %cst_113 = arith.constant 3.200000e+01 : f32
    %279 = vector.broadcast %cst_113 : f32 to vector<8x1xf32>
    %280 = arith.divf %278, %279 : vector<8x1xf32>
    %281 = vector.broadcast %273 : vector<8x1xf32> to vector<8x32xf32>
    %282 = arith.subf %269, %281 : vector<8x32xf32>
    %cst_114 = arith.constant 9.99999996E-13 : f32
    %283 = vector.broadcast %cst_114 : f32 to vector<8x1xf32>
    %284 = arith.addf %280, %283 : vector<8x1xf32>
    %285 = math.rsqrt %284 : vector<8x1xf32>
    %286 = vector.broadcast %285 : vector<8x1xf32> to vector<8x32xf32>
    %287 = arith.mulf %282, %286 : vector<8x32xf32>
    %288 = vector.broadcast %267 : vector<1x32xf32> to vector<8x32xf32>
    %289 = arith.mulf %287, %288 : vector<8x32xf32>
    %290 = vector.broadcast %268 : vector<1x32xf32> to vector<8x32xf32>
    %291 = arith.addf %289, %290 : vector<8x32xf32>
    %292 = arith.truncf %291 : vector<8x32xf32> to vector<8x32xbf16>
    %c0_115 = arith.constant 0 : index
    %c0_116 = arith.constant 0 : index
    %293 = vector.load %arg15[%c0_115, %c0_116] : memref<32x64xbf16, #tpu.memory_space<vmem>>, vector<32x64xbf16>
    %cst_117 = arith.constant dense<0.000000e+00> : vector<8x64xf32>
    %294 = tpu.matmul %292, %293, %cst_117 {dimension_numbers = #tpu.dot_dimension_numbers<[1], [0], [0], [1], [0, 0, 1, 1], [], []>} : vector<8x32xbf16>, vector<32x64xbf16>, vector<8x64xf32> -> vector<8x64xf32>
    %c0_118 = arith.constant 0 : index
    %c0_119 = arith.constant 0 : index
    %295 = vector.load %arg16[%c0_118, %c0_119] : memref<1x64xf32, #tpu.memory_space<vmem>>, vector<1x64xf32>
    %296 = vector.broadcast %295 : vector<1x64xf32> to vector<8x64xf32>
    %297 = arith.addf %294, %296 : vector<8x64xf32>
    %cst_120 = arith.constant 0.000000e+00 : f32
    %298 = vector.broadcast %cst_120 : f32 to vector<8x64xf32>
    %299 = arith.maximumf %297, %298 : vector<8x64xf32>
    %300 = arith.truncf %299 : vector<8x64xf32> to vector<8x64xbf16>
    %c0_121 = arith.constant 0 : index
    %c0_122 = arith.constant 0 : index
    %301 = vector.load %arg17[%c0_121, %c0_122] : memref<64x32xbf16, #tpu.memory_space<vmem>>, vector<64x32xbf16>
    %cst_123 = arith.constant dense<0.000000e+00> : vector<8x32xf32>
    %302 = tpu.matmul %300, %301, %cst_123 {dimension_numbers = #tpu.dot_dimension_numbers<[1], [0], [0], [1], [0, 0, 1, 1], [], []>} : vector<8x64xbf16>, vector<64x32xbf16>, vector<8x32xf32> -> vector<8x32xf32>
    %c0_124 = arith.constant 0 : index
    %c0_125 = arith.constant 0 : index
    %303 = vector.load %arg18[%c0_124, %c0_125] : memref<1x32xf32, #tpu.memory_space<vmem>>, vector<1x32xf32>
    %304 = vector.broadcast %303 : vector<1x32xf32> to vector<8x32xf32>
    %305 = arith.addf %302, %304 : vector<8x32xf32>
    %306 = vector.extract_strided_slice %12 {offsets = [2, 0], sizes = [1, 32], strides = [1, 1]} : vector<3x32xf32> to vector<1x32xf32>
    %307 = vector.extract_strided_slice %13 {offsets = [2, 0], sizes = [1, 32], strides = [1, 1]} : vector<3x32xf32> to vector<1x32xf32>
    %308 = arith.addf %305, %291 : vector<8x32xf32>
    %cst_126 = arith.constant dense<0.000000e+00> : vector<8xf32>
    %309 = vector.multi_reduction <add>, %308, %cst_126 [1] : vector<8x32xf32> to vector<8xf32>
    %310 = vector.shape_cast %309 : vector<8xf32> to vector<8x1xf32>
    %cst_127 = arith.constant 3.200000e+01 : f32
    %311 = vector.broadcast %cst_127 : f32 to vector<8x1xf32>
    %312 = arith.divf %310, %311 : vector<8x1xf32>
    %313 = vector.broadcast %312 : vector<8x1xf32> to vector<8x32xf32>
    %314 = arith.subf %308, %313 : vector<8x32xf32>
    %315 = arith.mulf %314, %314 : vector<8x32xf32>
    %cst_128 = arith.constant dense<0.000000e+00> : vector<8xf32>
    %316 = vector.multi_reduction <add>, %315, %cst_128 [1] : vector<8x32xf32> to vector<8xf32>
    %317 = vector.shape_cast %316 : vector<8xf32> to vector<8x1xf32>
    %cst_129 = arith.constant 3.200000e+01 : f32
    %318 = vector.broadcast %cst_129 : f32 to vector<8x1xf32>
    %319 = arith.divf %317, %318 : vector<8x1xf32>
    %320 = vector.broadcast %312 : vector<8x1xf32> to vector<8x32xf32>
    %321 = arith.subf %308, %320 : vector<8x32xf32>
    %cst_130 = arith.constant 9.99999996E-13 : f32
    %322 = vector.broadcast %cst_130 : f32 to vector<8x1xf32>
    %323 = arith.addf %319, %322 : vector<8x1xf32>
    %324 = math.rsqrt %323 : vector<8x1xf32>
    %325 = vector.broadcast %324 : vector<8x1xf32> to vector<8x32xf32>
    %326 = arith.mulf %321, %325 : vector<8x32xf32>
    %327 = vector.broadcast %306 : vector<1x32xf32> to vector<8x32xf32>
    %328 = arith.mulf %326, %327 : vector<8x32xf32>
    %329 = vector.broadcast %307 : vector<1x32xf32> to vector<8x32xf32>
    %330 = arith.addf %328, %329 : vector<8x32xf32>
    %c0_131 = arith.constant 0 : index
    %c0_132 = arith.constant 0 : index
    %c0_133 = arith.constant 0 : index
    %331 = vector.load %arg21[%c0_131, %c0_132, %c0_133] : memref<1x8x32xf32, #tpu.memory_space<vmem>>, vector<1x8x32xf32>
    %332 = vector.shape_cast %331 : vector<1x8x32xf32> to vector<8x32xf32>
    %333 = vector.shape_cast %330 : vector<8x32xf32> to vector<1x8x32xf32>
    tpu.vector_store %arg21[%c0_131, %c0_132, %c0_133], %333 {strides = array<i32>} : memref<1x8x32xf32, #tpu.memory_space<vmem>>, vector<1x8x32xf32>,
    return
  }
  func.func @transform_0(%arg0: i32) -> (i32, i32, i32) {
    %c0_i32 = arith.constant 0 : i32
    %c0_i32_0 = arith.constant 0 : i32
    %c0_i32_1 = arith.constant 0 : i32
    return %arg0, %c0_i32, %c0_i32_0 : i32, i32, i32
  }
  func.func @transform_1(%arg0: i32) -> (i32, i32, i32) {
    %c0_i32 = arith.constant 0 : i32
    %c0_i32_0 = arith.constant 0 : i32
    %c0_i32_1 = arith.constant 0 : i32
    return %arg0, %c0_i32, %c0_i32_0 : i32, i32, i32
  }
  func.func @transform_2(%arg0: i32) -> (i32, i32, i32) {
    %c0_i32 = arith.constant 0 : i32
    %c0_i32_0 = arith.constant 0 : i32
    %c0_i32_1 = arith.constant 0 : i32
    return %arg0, %c0_i32, %c0_i32_0 : i32, i32, i32
  }
  func.func @transform_3(%arg0: i32) -> (i32, i32, i32) {
    %c0_i32 = arith.constant 0 : i32
    %c0_i32_0 = arith.constant 0 : i32
    %c0_i32_1 = arith.constant 0 : i32
    return %arg0, %c0_i32, %c0_i32_0 : i32, i32, i32
  }
  func.func @transform_4(%arg0: i32) -> (i32, i32) {
    %c0_i32 = arith.constant 0 : i32
    %c0_i32_0 = arith.constant 0 : i32
    %c0_i32_1 = arith.constant 0 : i32
    return %c0_i32, %c0_i32_0 : i32, i32
  }
  func.func @transform_5(%arg0: i32) -> (i32, i32) {
    %c0_i32 = arith.constant 0 : i32
    %c0_i32_0 = arith.constant 0 : i32
    %c0_i32_1 = arith.constant 0 : i32
    return %c0_i32, %c0_i32_0 : i32, i32
  }
  func.func @transform_6(%arg0: i32) -> (i32, i32) {
    %c0_i32 = arith.constant 0 : i32
    %c0_i32_0 = arith.constant 0 : i32
    %c0_i32_1 = arith.constant 0 : i32
    return %c0_i32, %c0_i32_0 : i32, i32
  }
  func.func @transform_7(%arg0: i32) -> (i32, i32) {
    %c0_i32 = arith.constant 0 : i32
    %c0_i32_0 = arith.constant 0 : i32
    %c0_i32_1 = arith.constant 0 : i32
    return %c0_i32, %c0_i32_0 : i32, i32
  }
  func.func @transform_8(%arg0: i32) -> (i32, i32) {
    %c0_i32 = arith.constant 0 : i32
    %c0_i32_0 = arith.constant 0 : i32
    %c0_i32_1 = arith.constant 0 : i32
    return %c0_i32, %c0_i32_0 : i32, i32
  }
  func.func @transform_9(%arg0: i32) -> (i32, i32) {
    %c0_i32 = arith.constant 0 : i32
    %c0_i32_0 = arith.constant 0 : i32
    %c0_i32_1 = arith.constant 0 : i32
    return %c0_i32, %c0_i32_0 : i32, i32
  }
  func.func @transform_10(%arg0: i32) -> (i32, i32) {
    %c0_i32 = arith.constant 0 : i32
    %c0_i32_0 = arith.constant 0 : i32
    %c0_i32_1 = arith.constant 0 : i32
    return %c0_i32, %c0_i32_0 : i32, i32
  }
  func.func @transform_11(%arg0: i32) -> (i32, i32) {
    %c0_i32 = arith.constant 0 : i32
    %c0_i32_0 = arith.constant 0 : i32
    %c0_i32_1 = arith.constant 0 : i32
    return %c0_i32, %c0_i32_0 : i32, i32
  }
  func.func @transform_12(%arg0: i32) -> (i32, i32) {
    %c0_i32 = arith.constant 0 : i32
    %c0_i32_0 = arith.constant 0 : i32
    %c0_i32_1 = arith.constant 0 : i32
    return %c0_i32, %c0_i32_0 : i32, i32
  }
  func.func @transform_13(%arg0: i32) -> (i32, i32) {
    %c0_i32 = arith.constant 0 : i32
    %c0_i32_0 = arith.constant 0 : i32
    %c0_i32_1 = arith.constant 0 : i32
    return %c0_i32, %c0_i32_0 : i32, i32
  }
  func.func @transform_14(%arg0: i32) -> (i32, i32) {
    %c0_i32 = arith.constant 0 : i32
    %c0_i32_0 = arith.constant 0 : i32
    %c0_i32_1 = arith.constant 0 : i32
    return %c0_i32, %c0_i32_0 : i32, i32
  }
  func.func @transform_15(%arg0: i32) -> (i32, i32) {
    %c0_i32 = arith.constant 0 : i32
    %c0_i32_0 = arith.constant 0 : i32
    %c0_i32_1 = arith.constant 0 : i32
    return %c0_i32, %c0_i32_0 : i32, i32
  }
  func.func @transform_16(%arg0: i32) -> (i32, i32) {
    %c0_i32 = arith.constant 0 : i32
    %c0_i32_0 = arith.constant 0 : i32
    %c0_i32_1 = arith.constant 0 : i32
    return %c0_i32, %c0_i32_0 : i32, i32
  }
  func.func @transform_17(%arg0: i32) -> (i32, i32) {
    %c0_i32 = arith.constant 0 : i32
    %c0_i32_0 = arith.constant 0 : i32
    %c0_i32_1 = arith.constant 0 : i32
    return %c0_i32, %c0_i32_0 : i32, i32
  }
  func.func @transform_18(%arg0: i32) -> (i32, i32) {
    %c0_i32 = arith.constant 0 : i32
    %c0_i32_0 = arith.constant 0 : i32
    %c0_i32_1 = arith.constant 0 : i32
    return %c0_i32, %c0_i32_0 : i32, i32
  }
  func.func @transform_19(%arg0: i32) -> (i32, i32) {
    %c0_i32 = arith.constant 0 : i32
    %c0_i32_0 = arith.constant 0 : i32
    %c0_i32_1 = arith.constant 0 : i32
    return %c0_i32, %c0_i32_0 : i32, i32
  }
  func.func @transform_20(%arg0: i32) -> (i32, i32, i32) {
    %c0_i32 = arith.constant 0 : i32
    %c0_i32_0 = arith.constant 0 : i32
    %c0_i32_1 = arith.constant 0 : i32
    return %arg0, %c0_i32, %c0_i32_0 : i32, i32, i32
  }
}

module attributes {stable_mosaic.version = 11 : i64} {
  func.func @_linear_kernel(%arg0: i32, %arg1: i32, %arg2: memref<16x32xbf16, #tpu.memory_space<vmem>>, %arg3: memref<32x100xbf16, #tpu.memory_space<vmem>>, %arg4: memref<1x100xf32, #tpu.memory_space<vmem>>, %arg5: memref<16x100xf32, #tpu.memory_space<vmem>>) attributes {dimension_semantics = [#tpu.dimension_semantics<parallel>, #tpu.dimension_semantics<parallel>], iteration_bounds = array<i64: 1, 1>, scalar_prefetch = 0 : i64, scratch_operands = 0 : i64, tpu.core_type = #tpu.core_type<tc>, window_params = [{transform_indices = @transform_0, window_bounds = array<i64: 16, 32>}, {transform_indices = @transform_1, window_bounds = array<i64: 32, 100>}, {transform_indices = @transform_2, window_bounds = array<i64: 1, 100>}, {transform_indices = @transform_3, window_bounds = array<i64: 16, 100>}]} {
    %c0 = arith.constant 0 : index
    %c0_0 = arith.constant 0 : index
    %0 = vector.load %arg2[%c0, %c0_0] : memref<16x32xbf16, #tpu.memory_space<vmem>>, vector<16x32xbf16>
    %c0_1 = arith.constant 0 : index
    %c0_2 = arith.constant 0 : index
    %1 = vector.load %arg3[%c0_1, %c0_2] : memref<32x100xbf16, #tpu.memory_space<vmem>>, vector<32x100xbf16>
    %cst = arith.constant dense<0.000000e+00> : vector<16x100xf32>
    %2 = tpu.matmul %0, %1, %cst {dimension_numbers = #tpu.dot_dimension_numbers<[1], [0], [0], [1], [0, 0, 1, 1], [], []>} : vector<16x32xbf16>, vector<32x100xbf16>, vector<16x100xf32> -> vector<16x100xf32>
    %c0_3 = arith.constant 0 : index
    %c0_4 = arith.constant 0 : index
    %3 = vector.load %arg4[%c0_3, %c0_4] : memref<1x100xf32, #tpu.memory_space<vmem>>, vector<1x100xf32>
    %4 = vector.broadcast %3 : vector<1x100xf32> to vector<16x100xf32>
    %5 = arith.addf %2, %4 : vector<16x100xf32>
    %c0_5 = arith.constant 0 : index
    %c0_6 = arith.constant 0 : index
    %6 = vector.load %arg5[%c0_5, %c0_6] : memref<16x100xf32, #tpu.memory_space<vmem>>, vector<16x100xf32>
    tpu.vector_store %arg5[%c0_5, %c0_6], %5 {strides = array<i32>} : memref<16x100xf32, #tpu.memory_space<vmem>>, vector<16x100xf32>,
    return
  }
  func.func @transform_0(%arg0: i32, %arg1: i32) -> (i32, i32) {
    %c0_i32 = arith.constant 0 : i32
    %c0_i32_0 = arith.constant 0 : i32
    return %arg1, %c0_i32 : i32, i32
  }
  func.func @transform_1(%arg0: i32, %arg1: i32) -> (i32, i32) {
    %c0_i32 = arith.constant 0 : i32
    %c0_i32_0 = arith.constant 0 : i32
    return %c0_i32, %arg0 : i32, i32
  }
  func.func @transform_2(%arg0: i32, %arg1: i32) -> (i32, i32) {
    %c0_i32 = arith.constant 0 : i32
    %c0_i32_0 = arith.constant 0 : i32
    return %c0_i32, %arg0 : i32, i32
  }
  func.func @transform_3(%arg0: i32, %arg1: i32) -> (i32, i32) {
    %c0_i32 = arith.constant 0 : i32
    return %arg1, %arg0 : i32, i32
  }
}

</mosaic_0001>

<llo_original>
// kernel: tpu_custom_call.1
$region0: #{tpu_custom_call.1}
  #allocation0 [shape = 'u32[]', space=smem, size = 0x4, offset = 0x4, fixed_abs, tag = 'smem constant byte address 0x4 - core index']
  #allocation1 [shape = 'u32[72,128]{1,0:T(1,128)}', space=vmem, size = 0x9000, scoped, tag = 'internal scratch']
  %s0 = inlined_call_operand.hbm [shape: f32[8,128], index: 0, kind: input, shape index: {}]
  %s1 = inlined_call_operand.hbm [shape: f32[8,128], index: 1, kind: output, shape index: {}]
  %s2 = sld [smem:[#allocation0]]
  $region18: #{tpu_custom_call.1} parent=0
    _
  %s4 = ssub.s32 1, %s2
  %s5 = scalar_select 0, %s4, %s2
  $region1: #{tpu_custom_call.1} parent=0
    #allocation2 [shape = 'u8[4096]{0}', space=vmem, size = 0x1000, scoped, tag = 'input window, operand 0, single buffered']
    #allocation3 [shape = 's32[1]{0}', space=sflag, size = 0x4, scoped, tag = 'scoped memory for tpu_custom_call.1']
    #allocation4 [shape = 's32[1]{0}', space=sflag, size = 0x4, scoped, tag = 'scoped memory for tpu_custom_call.1']
    #allocation5 [shape = 'u8[4096]{0}', space=vmem, size = 0x1000, scoped, tag = 'output window, operand 0, single buffered']
    %6 = vsyncpa [#allocation3], 0
    %7 = vsyncpa [#allocation4], 0
    // Predicated region
    $region2: #{tpu_custom_call.1} parent=1 // pred_check
      _
    $region3: #{tpu_custom_call.1} parent=1 // pred_check_branch
      %9 = sbr.rel (0) target = $region5
    $region4: #{tpu_custom_call.1} parent=1 // pred_region
      %11 = vsyncadd [#allocation3], 0
      %s13 = sshll.u32 %s0, 4
      %s14 = int_to_ptr.hbm [resolvable:$true] %s13
      %s15 = sshll.u32 [#allocation2], 4
      %s16 = int_to_ptr.vmem [resolvable:$true] %s15
      %18 = dma.hbm_to_vmem [thread:$0]  %s14, 128, %s16, [#allocation3]
    $region5: #{tpu_custom_call.1} parent=1 // pred_fallthru
      _
    // Predicated region
    $region6: #{tpu_custom_call.1} parent=1 // pred_check
      _
    $region7: #{tpu_custom_call.1} parent=1 // pred_check_branch
      %20 = sbr.rel (0) target = $region9
    $region8: #{tpu_custom_call.1} parent=1 // pred_region
      %22 = dma.done [#allocation3], 128
    $region9: #{tpu_custom_call.1} parent=1 // pred_fallthru
      _
    %v23 = vld [vmem:[#allocation2] sm:$0xff]
    %v24 = vadd.f32 %v23, 1.0
    %25 = vst [vmem:[#allocation5] sm:$0xff] %v24
    // Predicated region
    $region10: #{tpu_custom_call.1} parent=1 // pred_check
      _
    $region11: #{tpu_custom_call.1} parent=1 // pred_check_branch
      %27 = sbr.rel (0) target = $region13
    $region12: #{tpu_custom_call.1} parent=1 // pred_region
      %29 = vsyncadd [#allocation4], 0
      %s31 = sshll.u32 [#allocation5], 4
      %s32 = int_to_ptr.vmem [resolvable:$true] %s31
      %s33 = sshll.u32 %s1, 4
      %s34 = int_to_ptr.hbm [resolvable:$true] %s33
      %36 = dma.vmem_to_hbm [thread:$0]  %s32, 128, %s34, [#allocation4]
    $region13: #{tpu_custom_call.1} parent=1 // pred_fallthru
      _
    // Predicated region
    $region14: #{tpu_custom_call.1} parent=1 // pred_check
      _
    $region15: #{tpu_custom_call.1} parent=1 // pred_check_branch
      %38 = sbr.rel (0) target = $region17
    $region16: #{tpu_custom_call.1} parent=1 // pred_region
      %40 = dma.done [#allocation4], 128
    $region17: #{tpu_custom_call.1} parent=1 // pred_fallthru
      _
    %41 = vsyncpa [#allocation3], 1
    %42 = vsyncpa [#allocation4], 1

// kernel: decoder_forward.5
$region0: #{decoder_forward.5}
  #allocation0 [shape = 'u32[]', space=smem, size = 0x4, offset = 0x4, fixed_abs, tag = 'smem constant byte address 0x4 - core index']
  #allocation1 [shape = 'u32[72,128]{1,0:T(1,128)}', space=vmem, size = 0x9000, scoped, tag = 'internal scratch']
  %s0 = inlined_call_operand.vmem [shape: bf16[16,32], index: 0, kind: input, shape index: {}]
  %s1 = inlined_call_operand.vmem [shape: bf16[32,100], index: 1, kind: input, shape index: {}]
  %s2 = inlined_call_operand.vmem [shape: f32[1,100], index: 2, kind: input, shape index: {}]
  %s3 = inlined_call_operand.hbm [shape: f32[16,100], index: 3, kind: output, shape index: {}]
  %s4 = sld [smem:[#allocation0]]
  $region22: #{decoder_forward.5} parent=0
    _
  %s6 = ssub.s32 1, %s4
  %s7 = scalar_select 0, %s6, %s4
  $region1: #{decoder_forward.5} parent=0
    #allocation2 [shape = 'u8[8192]{0}', space=vmem, size = 0x2000, scoped, tag = 'output window, operand 0, single buffered']
    #allocation3 [shape = 's32[1]{0}', space=sflag, size = 0x4, scoped, tag = 'scoped memory for decoder_forward.5']
    %8 = vsyncpa [#allocation3], 0
    // Predicated region
    $region2: #{decoder_forward.5} parent=1 // pred_check
      _
    $region3: #{decoder_forward.5} parent=1 // pred_check_branch
      %10 = sbr.rel (0) target = $region5
    $region4: #{decoder_forward.5} parent=1 // pred_region
      _
    $region5: #{decoder_forward.5} parent=1 // pred_fallthru
      _
    // Predicated region
    $region6: #{decoder_forward.5} parent=1 // pred_check
      _
    $region7: #{decoder_forward.5} parent=1 // pred_check_branch
      %12 = sbr.rel (0) target = $region9
    $region8: #{decoder_forward.5} parent=1 // pred_region
      _
    $region9: #{decoder_forward.5} parent=1 // pred_fallthru
      _
    // Predicated region
    $region10: #{decoder_forward.5} parent=1 // pred_check
      _
    $region11: #{decoder_forward.5} parent=1 // pred_check_branch
      %14 = sbr.rel (0) target = $region13
    $region12: #{decoder_forward.5} parent=1 // pred_region
      _
    $region13: #{decoder_forward.5} parent=1 // pred_fallthru
      _
    %v16 = vld [vmem:[%s0] sm:$0xf]
    %v17 = vld [vmem:[%s0 + $0x4] sm:$0xf]
    %v18 = vld [vmem:[%s1] sm:$0xf]
    %v19 = vld [vmem:[%s1 + $0x4] sm:$0xf]
    %v20 = vld [vmem:[%s1 + $0x8] sm:$0xf]
    %v21 = vld [vmem:[%s1 + $0xc] sm:$0xf]
    %v22 = vld [vmem:[%s2] sm:$0x1]
    %v24 = vperm.slane %v22, 0
    %v28 = vunpack.c.l.b16 %v16
    %v29 = vunpack.c.l.b16 %v17
    %v30 = vpack.c.b16 %v29, %v28
    %v35 = vunpack.c.l.b16 %v18
    %v36 = vunpack.c.l.b16 %v19
    %v37 = vunpack.c.l.b16 %v20
    %v38 = vunpack.c.l.b16 %v21
    %v39 = vpack.c.b16 %v36, %v35
    %v40 = vpack.c.b16 %v38, %v37
    %vm43 = vcmask 261120
    %v45 = vsel %vm43, %v30, 0
    %47 = vmatpush.bf16.msra.mxu0 0
    %48 = vmatpush.bf16.msra.mxu0 0
    %49 = vmatpush.bf16.msra.mxu0 0
    %50 = vmatpush.bf16.msra.mxu0 0
    %51 = vmatpush.bf16.msra.mxu0 0
    %52 = vmatpush.bf16.msra.mxu0 0
    %53 = vmatpush.bf16.msra.mxu0 %v40
    %54 = vmatpush.bf16.msra.mxu0 %v39
    %55 = vmatmul.bf16.gmra.mxu0 %v45
    %v56 = vpop.f32.mrf.mxu0
    %v57 = vadd.f32 %v24, %v56
    %v58 = vpop.f32.mrf.mxu0
    %v59 = vadd.f32 %v24, %v58
    %60 = vdwg.mxu0
    %vm61 = vcmask 818176
    %62 = vst.msk [vmem:[#allocation2] sm:$0xff] %vm61, %v57
    %63 = vst.msk [vmem:[#allocation2 + $0x8] sm:$0xff] %vm61, %v59
    // Predicated region
    $region14: #{decoder_forward.5} parent=1 // pred_check
      _
    $region15: #{decoder_forward.5} parent=1 // pred_check_branch
      %65 = sbr.rel (0) target = $region17
    $region16: #{decoder_forward.5} parent=1 // pred_region
      %67 = vsyncadd [#allocation3], 0
      %s68 = sshll.u32 [#allocation2], 4
      %s69 = int_to_ptr.vmem [resolvable:$true] %s68
      %s70 = sshll.u32 %s3, 4
      %s71 = int_to_ptr.hbm [resolvable:$true] %s70
      %76 = dma.vmem_to_hbm [thread:$0]  %s69, 256, %s71, [#allocation3], 128, 128, 8
    $region17: #{decoder_forward.5} parent=1 // pred_fallthru
      _
    // Predicated region
    $region18: #{decoder_forward.5} parent=1 // pred_check
      _
    $region19: #{decoder_forward.5} parent=1 // pred_check_branch
      %78 = sbr.rel (0) target = $region21
    $region20: #{decoder_forward.5} parent=1 // pred_region
      %80 = dma.done [#allocation3], 256
    $region21: #{decoder_forward.5} parent=1 // pred_fallthru
      _
    %81 = vsyncpa [#allocation3], 1

// kernel: decoder_forward.3
$region0: #{decoder_forward.3}
  #allocation0 [shape = 'u32[]', space=smem, size = 0x4, offset = 0x4, fixed_abs, tag = 'smem constant byte address 0x4 - core index']
  #allocation1 [shape = 'u32[72,128]{1,0:T(1,128)}', space=vmem, size = 0x9000, scoped, tag = 'internal scratch']
  #allocation2 [shape = 'f32[8,32]{1,0:T(8,128)}', space=vmem, size = 0x1000, scoped, tag = 'scratch operand']
  %s0 = inlined_call_operand.vmem [shape: f32[2,8,32], index: 0, kind: input, shape index: {}]
  %s1 = inlined_call_operand.vmem [shape: bf16[2,8,32], index: 1, kind: input, shape index: {}]
  %s2 = inlined_call_operand.vmem [shape: s8[2,8,8], index: 2, kind: input, shape index: {}]
  %s3 = inlined_call_operand.vmem [shape: s8[2,8,8], index: 3, kind: input, shape index: {}]
  %s4 = inlined_call_operand.vmem [shape: bf16[32,96], index: 4, kind: input, shape index: {}]
  %s5 = inlined_call_operand.vmem [shape: f32[1,96], index: 5, kind: input, shape index: {}]
  %s6 = inlined_call_operand.vmem [shape: bf16[32,32], index: 6, kind: input, shape index: {}]
  %s7 = inlined_call_operand.vmem [shape: f32[1,32], index: 7, kind: input, shape index: {}]
  %s8 = inlined_call_operand.vmem [shape: bf16[32,32], index: 8, kind: input, shape index: {}]
  %s9 = inlined_call_operand.vmem [shape: f32[1,32], index: 9, kind: input, shape index: {}]
  %s10 = inlined_call_operand.vmem [shape: bf16[32,64], index: 10, kind: input, shape index: {}]
  %s11 = inlined_call_operand.vmem [shape: f32[1,64], index: 11, kind: input, shape index: {}]
  %s12 = inlined_call_operand.vmem [shape: bf16[32,32], index: 12, kind: input, shape index: {}]
  %s13 = inlined_call_operand.vmem [shape: f32[1,32], index: 13, kind: input, shape index: {}]
  %s14 = inlined_call_operand.vmem [shape: bf16[32,64], index: 14, kind: input, shape index: {}]
  %s15 = inlined_call_operand.vmem [shape: f32[1,64], index: 15, kind: input, shape index: {}]
  %s16 = inlined_call_operand.vmem [shape: bf16[64,32], index: 16, kind: input, shape index: {}]
  %s17 = inlined_call_operand.vmem [shape: f32[1,32], index: 17, kind: input, shape index: {}]
  %s18 = inlined_call_operand.vmem [shape: f32[3,32], index: 18, kind: input, shape index: {}]
  %s19 = inlined_call_operand.vmem [shape: f32[3,32], index: 19, kind: input, shape index: {}]
  %s20 = inlined_call_operand.vmem [shape: f32[2,8,32], index: 20, kind: output, shape index: {}]
  %s21 = sld [smem:[#allocation0]]
  $region113: #{decoder_forward.3} parent=0
    _
  %s23 = ssub.s32 1, %s21
  %s24 = scalar_select 0, %s23, %s21
  loop: start=0, step=1, limit=4
  $region2: #{decoder_forward.3} parent=0 // loop_pre_header
    _
  $region3: #{decoder_forward.3} parent=0 // loop_header
    %s26 = sphi 0, %s30
    %p27 = scmp.ge.s32.totalorder %s26, 4
    %s36 = sphi 0, %s38
    %s39 = sphi 0, %s36
    %s40 = sphi 0, %s39
    %s56 = sphi 0, %s40
    %s62 = sphi 0, %s64
    %s65 = sphi 0, %s62
    %s66 = sphi 0, %s65
    %s82 = sphi 0, %s66
    %s88 = sphi 0, %s90
    %s91 = sphi 0, %s88
    %s92 = sphi 0, %s91
    %s108 = sphi 0, %s92
    %s114 = sphi 0, %s116
    %s117 = sphi 0, %s114
    %s118 = sphi 0, %s117
    %s134 = sphi 0, %s118
    %s138 = sphi 0, %s138
    %s140 = sphi 0, %s138
    %s141 = sphi 0, %s140
    %s155 = sphi 0, %s141
    %s159 = sphi 0, %s159
    %s161 = sphi 0, %s159
    %s162 = sphi 0, %s161
    %s176 = sphi 0, %s162
    %s180 = sphi 0, %s180
    %s182 = sphi 0, %s180
    %s183 = sphi 0, %s182
    %s197 = sphi 0, %s183
    %s201 = sphi 0, %s201
    %s203 = sphi 0, %s201
    %s204 = sphi 0, %s203
    %s218 = sphi 0, %s204
    %s222 = sphi 0, %s222
    %s224 = sphi 0, %s222
    %s225 = sphi 0, %s224
    %s239 = sphi 0, %s225
    %s243 = sphi 0, %s243
    %s245 = sphi 0, %s243
    %s246 = sphi 0, %s245
    %s260 = sphi 0, %s246
    %s264 = sphi 0, %s264
    %s266 = sphi 0, %s264
    %s267 = sphi 0, %s266
    %s281 = sphi 0, %s267
    %s285 = sphi 0, %s285
    %s287 = sphi 0, %s285
    %s288 = sphi 0, %s287
    %s302 = sphi 0, %s288
    %s306 = sphi 0, %s306
    %s308 = sphi 0, %s306
    %s309 = sphi 0, %s308
    %s323 = sphi 0, %s309
    %s327 = sphi 0, %s327
    %s329 = sphi 0, %s327
    %s330 = sphi 0, %s329
    %s344 = sphi 0, %s330
    %s348 = sphi 0, %s348
    %s350 = sphi 0, %s348
    %s351 = sphi 0, %s350
    %s365 = sphi 0, %s351
    %s369 = sphi 0, %s369
    %s371 = sphi 0, %s369
    %s372 = sphi 0, %s371
    %s386 = sphi 0, %s372
    %s390 = sphi 0, %s390
    %s392 = sphi 0, %s390
    %s393 = sphi 0, %s392
    %s407 = sphi 0, %s393
    %s411 = sphi 0, %s411
    %s413 = sphi 0, %s411
    %s414 = sphi 0, %s413
    %s428 = sphi 0, %s414
    %s432 = sphi 0, %s432
    %s434 = sphi 0, %s432
    %s435 = sphi 0, %s434
    %s449 = sphi 0, %s435
    %s453 = sphi 0, %s453
    %s455 = sphi 0, %s453
    %s456 = sphi 0, %s455
    %s470 = sphi 0, %s456
    %s476 = sphi 0, %s478
    %s479 = sphi 0, %s476
    %s480 = sphi 0, %s479
    %s496 = sphi 0, %s480
  $region4: #{decoder_forward.3} parent=0 // loop_header_branch
    %29 = sbr.rel (%p27) target = $region8
  $region5: #{decoder_forward.3} parent=0 // loop_body
    %s31 = ssub.s32 %s26, 1
    %s32 = ssub.s32 %s26, 2
    %s33 = sadd.s32 %s26, 1
    %s34 = ssub.s32 %s26, %s33
    %p35 = scmp.eq.s32.totalorder %s34, 0
    %s37 = sadd.s32 %s36, 1
    %s38 = scalar_select %p35, %s36, %s37
    %p41 = pneg %p35
    %p42 = scmp.eq.s32.totalorder %s26, 1
    %p43 = por %p41, %p42
    %p44 = scmp.ne.s32.totalorder %s36, %s39
    %p45 = scmp.eq.s32.totalorder %s26, 0
    %p46 = por %p44, %p45
    %p47 = scmp.ne.s32.totalorder %s36, %s39
    %p48 = scmp.eq.s32.totalorder %s31, 1
    %p49 = por %p47, %p48
    %p50 = scmp.ne.s32.totalorder %s39, %s40
    %p51 = scmp.eq.s32.totalorder %s31, 0
    %p52 = por %p50, %p51
    %p53 = scmp.ne.s32.totalorder %s39, %s40
    %p54 = scmp.eq.s32.totalorder %s32, 1
    %p55 = por %p53, %p54
    %p57 = scmp.ne.s32.totalorder %s40, %s56
    %p58 = scmp.eq.s32.totalorder %s32, 0
    %p59 = por %p57, %p58
    %s60 = ssub.s32 %s26, %s33
    %p61 = scmp.eq.s32.totalorder %s60, 0
    %s63 = sadd.s32 %s62, 1
    %s64 = scalar_select %p61, %s62, %s63
    %p67 = pneg %p61
    %p68 = scmp.eq.s32.totalorder %s26, 1
    %p69 = por %p67, %p68
    %p70 = scmp.ne.s32.totalorder %s62, %s65
    %p71 = scmp.eq.s32.totalorder %s26, 0
    %p72 = por %p70, %p71
    %p73 = scmp.ne.s32.totalorder %s62, %s65
    %p74 = scmp.eq.s32.totalorder %s31, 1
    %p75 = por %p73, %p74
    %p76 = scmp.ne.s32.totalorder %s65, %s66
    %p77 = scmp.eq.s32.totalorder %s31, 0
    %p78 = por %p76, %p77
    %p79 = scmp.ne.s32.totalorder %s65, %s66
    %p80 = scmp.eq.s32.totalorder %s32, 1
    %p81 = por %p79, %p80
    %p83 = scmp.ne.s32.totalorder %s66, %s82
    %p84 = scmp.eq.s32.totalorder %s32, 0
    %p85 = por %p83, %p84
    %s86 = ssub.s32 %s26, %s33
    %p87 = scmp.eq.s32.totalorder %s86, 0
    %s89 = sadd.s32 %s88, 1
    %s90 = scalar_select %p87, %s88, %s89
    %p93 = pneg %p87
    %p94 = scmp.eq.s32.totalorder %s26, 1
    %p95 = por %p93, %p94
    %p96 = scmp.ne.s32.totalorder %s88, %s91
    %p97 = scmp.eq.s32.totalorder %s26, 0
    %p98 = por %p96, %p97
    %p99 = scmp.ne.s32.totalorder %s88, %s91
    %p100 = scmp.eq.s32.totalorder %s31, 1
    %p101 = por %p99, %p100
    %p102 = scmp.ne.s32.totalorder %s91, %s92
    %p103 = scmp.eq.s32.totalorder %s31, 0
    %p104 = por %p102, %p103
    %p105 = scmp.ne.s32.totalorder %s91, %s92
    %p106 = scmp.eq.s32.totalorder %s32, 1
    %p107 = por %p105, %p106
    %p109 = scmp.ne.s32.totalorder %s92, %s108
    %p110 = scmp.eq.s32.totalorder %s32, 0
    %p111 = por %p109, %p110
    %s112 = ssub.s32 %s26, %s33
    %p113 = scmp.eq.s32.totalorder %s112, 0
    %s115 = sadd.s32 %s114, 1
    %s116 = scalar_select %p113, %s114, %s115
    %p119 = pneg %p113
    %p120 = scmp.eq.s32.totalorder %s26, 1
    %p121 = por %p119, %p120
    %p122 = scmp.ne.s32.totalorder %s114, %s117
    %p123 = scmp.eq.s32.totalorder %s26, 0
    %p124 = por %p122, %p123
    %p125 = scmp.ne.s32.totalorder %s114, %s117
    %p126 = scmp.eq.s32.totalorder %s31, 1
    %p127 = por %p125, %p126
    %p128 = scmp.ne.s32.totalorder %s117, %s118
    %p129 = scmp.eq.s32.totalorder %s31, 0
    %p130 = por %p128, %p129
    %p131 = scmp.ne.s32.totalorder %s117, %s118
    %p132 = scmp.eq.s32.totalorder %s32, 1
    %p133 = por %p131, %p132
    %p135 = scmp.ne.s32.totalorder %s118, %s134
    %p136 = scmp.eq.s32.totalorder %s32, 0
    %p137 = por %p135, %p136
    %s139 = sadd.s32 %s138, 1
    %p142 = scmp.eq.s32.totalorder %s26, 1
    %p143 = scmp.ne.s32.totalorder %s138, %s140
    %p144 = scmp.eq.s32.totalorder %s26, 0
    %p145 = por %p143, %p144
    %p146 = scmp.ne.s32.totalorder %s138, %s140
    %p147 = scmp.eq.s32.totalorder %s31, 1
    %p148 = por %p146, %p147
    %p149 = scmp.ne.s32.totalorder %s140, %s141
    %p150 = scmp.eq.s32.totalorder %s31, 0
    %p151 = por %p149, %p150
    %p152 = scmp.ne.s32.totalorder %s140, %s141
    %p153 = scmp.eq.s32.totalorder %s32, 1
    %p154 = por %p152, %p153
    %p156 = scmp.ne.s32.totalorder %s141, %s155
    %p157 = scmp.eq.s32.totalorder %s32, 0
    %p158 = por %p156, %p157
    %s160 = sadd.s32 %s159, 1
    %p163 = scmp.eq.s32.totalorder %s26, 1
    %p164 = scmp.ne.s32.totalorder %s159, %s161
    %p165 = scmp.eq.s32.totalorder %s26, 0
    %p166 = por %p164, %p165
    %p167 = scmp.ne.s32.totalorder %s159, %s161
    %p168 = scmp.eq.s32.totalorder %s31, 1
    %p169 = por %p167, %p168
    %p170 = scmp.ne.s32.totalorder %s161, %s162
    %p171 = scmp.eq.s32.totalorder %s31, 0
    %p172 = por %p170, %p171
    %p173 = scmp.ne.s32.totalorder %s161, %s162
    %p174 = scmp.eq.s32.totalorder %s32, 1
    %p175 = por %p173, %p174
    %p177 = scmp.ne.s32.totalorder %s162, %s176
    %p178 = scmp.eq.s32.totalorder %s32, 0
    %p179 = por %p177, %p178
    %s181 = sadd.s32 %s180, 1
    %p184 = scmp.eq.s32.totalorder %s26, 1
    %p185 = scmp.ne.s32.totalorder %s180, %s182
    %p186 = scmp.eq.s32.totalorder %s26, 0
    %p187 = por %p185, %p186
    %p188 = scmp.ne.s32.totalorder %s180, %s182
    %p189 = scmp.eq.s32.totalorder %s31, 1
    %p190 = por %p188, %p189
    %p191 = scmp.ne.s32.totalorder %s182, %s183
    %p192 = scmp.eq.s32.totalorder %s31, 0
    %p193 = por %p191, %p192
    %p194 = scmp.ne.s32.totalorder %s182, %s183
    %p195 = scmp.eq.s32.totalorder %s32, 1
    %p196 = por %p194, %p195
    %p198 = scmp.ne.s32.totalorder %s183, %s197
    %p199 = scmp.eq.s32.totalorder %s32, 0
    %p200 = por %p198, %p199
    %s202 = sadd.s32 %s201, 1
    %p205 = scmp.eq.s32.totalorder %s26, 1
    %p206 = scmp.ne.s32.totalorder %s201, %s203
    %p207 = scmp.eq.s32.totalorder %s26, 0
    %p208 = por %p206, %p207
    %p209 = scmp.ne.s32.totalorder %s201, %s203
    %p210 = scmp.eq.s32.totalorder %s31, 1
    %p211 = por %p209, %p210
    %p212 = scmp.ne.s32.totalorder %s203, %s204
    %p213 = scmp.eq.s32.totalorder %s31, 0
    %p214 = por %p212, %p213
    %p215 = scmp.ne.s32.totalorder %s203, %s204
    %p216 = scmp.eq.s32.totalorder %s32, 1
    %p217 = por %p215, %p216
    %p219 = scmp.ne.s32.totalorder %s204, %s218
    %p220 = scmp.eq.s32.totalorder %s32, 0
    %p221 = por %p219, %p220
    %s223 = sadd.s32 %s222, 1
    %p226 = scmp.eq.s32.totalorder %s26, 1
    %p227 = scmp.ne.s32.totalorder %s222, %s224
    %p228 = scmp.eq.s32.totalorder %s26, 0
    %p229 = por %p227, %p228
    %p230 = scmp.ne.s32.totalorder %s222, %s224
    %p231 = scmp.eq.s32.totalorder %s31, 1
    %p232 = por %p230, %p231
    %p233 = scmp.ne.s32.totalorder %s224, %s225
    %p234 = scmp.eq.s32.totalorder %s31, 0
    %p235 = por %p233, %p234
    %p236 = scmp.ne.s32.totalorder %s224, %s225
    %p237 = scmp.eq.s32.totalorder %s32, 1
    %p238 = por %p236, %p237
    %p240 = scmp.ne.s32.totalorder %s225, %s239
    %p241 = scmp.eq.s32.totalorder %s32, 0
    %p242 = por %p240, %p241
    %s244 = sadd.s32 %s243, 1
    %p247 = scmp.eq.s32.totalorder %s26, 1
    %p248 = scmp.ne.s32.totalorder %s243, %s245
    %p249 = scmp.eq.s32.totalorder %s26, 0
    %p250 = por %p248, %p249
    %p251 = scmp.ne.s32.totalorder %s243, %s245
    %p252 = scmp.eq.s32.totalorder %s31, 1
    %p253 = por %p251, %p252
    %p254 = scmp.ne.s32.totalorder %s245, %s246
    %p255 = scmp.eq.s32.totalorder %s31, 0
    %p256 = por %p254, %p255
    %p257 = scmp.ne.s32.totalorder %s245, %s246
    %p258 = scmp.eq.s32.totalorder %s32, 1
    %p259 = por %p257, %p258
    %p261 = scmp.ne.s32.totalorder %s246, %s260
    %p262 = scmp.eq.s32.totalorder %s32, 0
    %p263 = por %p261, %p262
    %s265 = sadd.s32 %s264, 1
    %p268 = scmp.eq.s32.totalorder %s26, 1
    %p269 = scmp.ne.s32.totalorder %s264, %s266
    %p270 = scmp.eq.s32.totalorder %s26, 0
    %p271 = por %p269, %p270
    %p272 = scmp.ne.s32.totalorder %s264, %s266
    %p273 = scmp.eq.s32.totalorder %s31, 1
    %p274 = por %p272, %p273
    %p275 = scmp.ne.s32.totalorder %s266, %s267
    %p276 = scmp.eq.s32.totalorder %s31, 0
    %p277 = por %p275, %p276
    %p278 = scmp.ne.s32.totalorder %s266, %s267
    %p279 = scmp.eq.s32.totalorder %s32, 1
    %p280 = por %p278, %p279
    %p282 = scmp.ne.s32.totalorder %s267, %s281
    %p283 = scmp.eq.s32.totalorder %s32, 0
    %p284 = por %p282, %p283
    %s286 = sadd.s32 %s285, 1
    %p289 = scmp.eq.s32.totalorder %s26, 1
    %p290 = scmp.ne.s32.totalorder %s285, %s287
    %p291 = scmp.eq.s32.totalorder %s26, 0
    %p292 = por %p290, %p291
    %p293 = scmp.ne.s32.totalorder %s285, %s287
    %p294 = scmp.eq.s32.totalorder %s31, 1
    %p295 = por %p293, %p294
    %p296 = scmp.ne.s32.totalorder %s287, %s288
    %p297 = scmp.eq.s32.totalorder %s31, 0
    %p298 = por %p296, %p297
    %p299 = scmp.ne.s32.totalorder %s287, %s288
    %p300 = scmp.eq.s32.totalorder %s32, 1
    %p301 = por %p299, %p300
    %p303 = scmp.ne.s32.totalorder %s288, %s302
    %p304 = scmp.eq.s32.totalorder %s32, 0
    %p305 = por %p303, %p304
    %s307 = sadd.s32 %s306, 1
    %p310 = scmp.eq.s32.totalorder %s26, 1
    %p311 = scmp.ne.s32.totalorder %s306, %s308
    %p312 = scmp.eq.s32.totalorder %s26, 0
    %p313 = por %p311, %p312
    %p314 = scmp.ne.s32.totalorder %s306, %s308
    %p315 = scmp.eq.s32.totalorder %s31, 1
    %p316 = por %p314, %p315
    %p317 = scmp.ne.s32.totalorder %s308, %s309
    %p318 = scmp.eq.s32.totalorder %s31, 0
    %p319 = por %p317, %p318
    %p320 = scmp.ne.s32.totalorder %s308, %s309
    %p321 = scmp.eq.s32.totalorder %s32, 1
    %p322 = por %p320, %p321
    %p324 = scmp.ne.s32.totalorder %s309, %s323
    %p325 = scmp.eq.s32.totalorder %s32, 0
    %p326 = por %p324, %p325
    %s328 = sadd.s32 %s327, 1
    %p331 = scmp.eq.s32.totalorder %s26, 1
    %p332 = scmp.ne.s32.totalorder %s327, %s329
    %p333 = scmp.eq.s32.totalorder %s26, 0
    %p334 = por %p332, %p333
    %p335 = scmp.ne.s32.totalorder %s327, %s329
    %p336 = scmp.eq.s32.totalorder %s31, 1
    %p337 = por %p335, %p336
    %p338 = scmp.ne.s32.totalorder %s329, %s330
    %p339 = scmp.eq.s32.totalorder %s31, 0
    %p340 = por %p338, %p339
    %p341 = scmp.ne.s32.totalorder %s329, %s330
    %p342 = scmp.eq.s32.totalorder %s32, 1
    %p343 = por %p341, %p342
    %p345 = scmp.ne.s32.totalorder %s330, %s344
    %p346 = scmp.eq.s32.totalorder %s32, 0
    %p347 = por %p345, %p346
    %s349 = sadd.s32 %s348, 1
    %p352 = scmp.eq.s32.totalorder %s26, 1
    %p353 = scmp.ne.s32.totalorder %s348, %s350
    %p354 = scmp.eq.s32.totalorder %s26, 0
    %p355 = por %p353, %p354
    %p356 = scmp.ne.s32.totalorder %s348, %s350
    %p357 = scmp.eq.s32.totalorder %s31, 1
    %p358 = por %p356, %p357
    %p359 = scmp.ne.s32.totalorder %s350, %s351
    %p360 = scmp.eq.s32.totalorder %s31, 0
    %p361 = por %p359, %p360
    %p362 = scmp.ne.s32.totalorder %s350, %s351
    %p363 = scmp.eq.s32.totalorder %s32, 1
    %p364 = por %p362, %p363
    %p366 = scmp.ne.s32.totalorder %s351, %s365
    %p367 = scmp.eq.s32.totalorder %s32, 0
    %p368 = por %p366, %p367
    %s370 = sadd.s32 %s369, 1
    %p373 = scmp.eq.s32.totalorder %s26, 1
    %p374 = scmp.ne.s32.totalorder %s369, %s371
    %p375 = scmp.eq.s32.totalorder %s26, 0
    %p376 = por %p374, %p375
    %p377 = scmp.ne.s32.totalorder %s369, %s371
    %p378 = scmp.eq.s32.totalorder %s31, 1
    %p379 = por %p377, %p378
    %p380 = scmp.ne.s32.totalorder %s371, %s372
    %p381 = scmp.eq.s32.totalorder %s31, 0
    %p382 = por %p380, %p381
    %p383 = scmp.ne.s32.totalorder %s371, %s372
    %p384 = scmp.eq.s32.totalorder %s32, 1
    %p385 = por %p383, %p384
    %p387 = scmp.ne.s32.totalorder %s372, %s386
    %p388 = scmp.eq.s32.totalorder %s32, 0
    %p389 = por %p387, %p388
    %s391 = sadd.s32 %s390, 1
    %p394 = scmp.eq.s32.totalorder %s26, 1
    %p395 = scmp.ne.s32.totalorder %s390, %s392
    %p396 = scmp.eq.s32.totalorder %s26, 0
    %p397 = por %p395, %p396
    %p398 = scmp.ne.s32.totalorder %s390, %s392
    %p399 = scmp.eq.s32.totalorder %s31, 1
    %p400 = por %p398, %p399
    %p401 = scmp.ne.s32.totalorder %s392, %s393
    %p402 = scmp.eq.s32.totalorder %s31, 0
    %p403 = por %p401, %p402
    %p404 = scmp.ne.s32.totalorder %s392, %s393
    %p405 = scmp.eq.s32.totalorder %s32, 1
    %p406 = por %p404, %p405
    %p408 = scmp.ne.s32.totalorder %s393, %s407
    %p409 = scmp.eq.s32.totalorder %s32, 0
    %p410 = por %p408, %p409
    %s412 = sadd.s32 %s411, 1
    %p415 = scmp.eq.s32.totalorder %s26, 1
    %p416 = scmp.ne.s32.totalorder %s411, %s413
    %p417 = scmp.eq.s32.totalorder %s26, 0
    %p418 = por %p416, %p417
    %p419 = scmp.ne.s32.totalorder %s411, %s413
    %p420 = scmp.eq.s32.totalorder %s31, 1
    %p421 = por %p419, %p420
    %p422 = scmp.ne.s32.totalorder %s413, %s414
    %p423 = scmp.eq.s32.totalorder %s31, 0
    %p424 = por %p422, %p423
    %p425 = scmp.ne.s32.totalorder %s413, %s414
    %p426 = scmp.eq.s32.totalorder %s32, 1
    %p427 = por %p425, %p426
    %p429 = scmp.ne.s32.totalorder %s414, %s428
    %p430 = scmp.eq.s32.totalorder %s32, 0
    %p431 = por %p429, %p430
    %s433 = sadd.s32 %s432, 1
    %p436 = scmp.eq.s32.totalorder %s26, 1
    %p437 = scmp.ne.s32.totalorder %s432, %s434
    %p438 = scmp.eq.s32.totalorder %s26, 0
    %p439 = por %p437, %p438
    %p440 = scmp.ne.s32.totalorder %s432, %s434
    %p441 = scmp.eq.s32.totalorder %s31, 1
    %p442 = por %p440, %p441
    %p443 = scmp.ne.s32.totalorder %s434, %s435
    %p444 = scmp.eq.s32.totalorder %s31, 0
    %p445 = por %p443, %p444
    %p446 = scmp.ne.s32.totalorder %s434, %s435
    %p447 = scmp.eq.s32.totalorder %s32, 1
    %p448 = por %p446, %p447
    %p450 = scmp.ne.s32.totalorder %s435, %s449
    %p451 = scmp.eq.s32.totalorder %s32, 0
    %p452 = por %p450, %p451
    %s454 = sadd.s32 %s453, 1
    %p457 = scmp.eq.s32.totalorder %s26, 1
    %p458 = scmp.ne.s32.totalorder %s453, %s455
    %p459 = scmp.eq.s32.totalorder %s26, 0
    %p460 = por %p458, %p459
    %p461 = scmp.ne.s32.totalorder %s453, %s455
    %p462 = scmp.eq.s32.totalorder %s31, 1
    %p463 = por %p461, %p462
    %p464 = scmp.ne.s32.totalorder %s455, %s456
    %p465 = scmp.eq.s32.totalorder %s31, 0
    %p466 = por %p464, %p465
    %p467 = scmp.ne.s32.totalorder %s455, %s456
    %p468 = scmp.eq.s32.totalorder %s32, 1
    %p469 = por %p467, %p468
    %p471 = scmp.ne.s32.totalorder %s456, %s470
    %p472 = scmp.eq.s32.totalorder %s32, 0
    %p473 = por %p471, %p472
    %s474 = ssub.s32 %s26, %s33
    %p475 = scmp.eq.s32.totalorder %s474, 0
    %s477 = sadd.s32 %s476, 1
    %s478 = scalar_select %p475, %s476, %s477
    %p481 = pneg %p475
    %p482 = scmp.eq.s32.totalorder %s26, 1
    %p483 = por %p481, %p482
    %p484 = scmp.ne.s32.totalorder %s476, %s479
    %p485 = scmp.eq.s32.totalorder %s26, 0
    %p486 = por %p484, %p485
    %p487 = scmp.ne.s32.totalorder %s476, %s479
    %p488 = scmp.eq.s32.totalorder %s31, 1
    %p489 = por %p487, %p488
    %p490 = scmp.ne.s32.totalorder %s479, %s480
    %p491 = scmp.eq.s32.totalorder %s31, 0
    %p492 = por %p490, %p491
    %p493 = scmp.ne.s32.totalorder %s479, %s480
    %p494 = scmp.eq.s32.totalorder %s32, 1
    %p495 = por %p493, %p494
    %p497 = scmp.ne.s32.totalorder %s480, %s496
    %p498 = scmp.eq.s32.totalorder %s32, 0
    %p499 = por %p497, %p498
    %p500 = scmp.le.s32.totalorder 1, %s26
    %p501 = scmp.lt.s32.totalorder %s26, 3
    %p502 = pnand %p500, %p501
    %p503 = pneg %p502
    // Predicated region
    $region9: #{decoder_forward.3} parent=5 // pred_check
      _
    $region10: #{decoder_forward.3} parent=5 // pred_check_branch
      %505 = sbr.rel (%p502) target = $region12
    $region11: #{decoder_forward.3} parent=5 // pred_region
      %s506 = ssub.s32 %s26, 1
      // Predicated region
      $region13: #{decoder_forward.3} parent=11 // pred_check
        %p507 = pneg %p151
      $region14: #{decoder_forward.3} parent=11 // pred_check_branch
        %509 = sbr.rel (%p507) target = $region16
      $region15: #{decoder_forward.3} parent=11 // pred_region
        _
      $region16: #{decoder_forward.3} parent=11 // pred_fallthru
        _
      // Predicated region
      $region17: #{decoder_forward.3} parent=11 // pred_check
        %p510 = pneg %p172
      $region18: #{decoder_forward.3} parent=11 // pred_check_branch
        %512 = sbr.rel (%p510) target = $region20
      $region19: #{decoder_forward.3} parent=11 // pred_region
        _
      $region20: #{decoder_forward.3} parent=11 // pred_fallthru
        _
      // Predicated region
      $region21: #{decoder_forward.3} parent=11 // pred_check
        %p513 = pneg %p193
      $region22: #{decoder_forward.3} parent=11 // pred_check_branch
        %515 = sbr.rel (%p513) target = $region24
      $region23: #{decoder_forward.3} parent=11 // pred_region
        _
      $region24: #{decoder_forward.3} parent=11 // pred_fallthru
        _
      // Predicated region
      $region25: #{decoder_forward.3} parent=11 // pred_check
        %p516 = pneg %p214
      $region26: #{decoder_forward.3} parent=11 // pred_check_branch
        %518 = sbr.rel (%p516) target = $region28
      $region27: #{decoder_forward.3} parent=11 // pred_region
        _
      $region28: #{decoder_forward.3} parent=11 // pred_fallthru
        _
      // Predicated region
      $region29: #{decoder_forward.3} parent=11 // pred_check
        %p519 = pneg %p235
      $region30: #{decoder_forward.3} parent=11 // pred_check_branch
        %521 = sbr.rel (%p519) target = $region32
      $region31: #{decoder_forward.3} parent=11 // pred_region
        _
      $region32: #{decoder_forward.3} parent=11 // pred_fallthru
        _
      // Predicated region
      $region33: #{decoder_forward.3} parent=11 // pred_check
        %p522 = pneg %p256
      $region34: #{decoder_forward.3} parent=11 // pred_check_branch
        %524 = sbr.rel (%p522) target = $region36
      $region35: #{decoder_forward.3} parent=11 // pred_region
        _
      $region36: #{decoder_forward.3} parent=11 // pred_fallthru
        _
      // Predicated region
      $region37: #{decoder_forward.3} parent=11 // pred_check
        %p525 = pneg %p277
      $region38: #{decoder_forward.3} parent=11 // pred_check_branch
        %527 = sbr.rel (%p525) target = $region40
      $region39: #{decoder_forward.3} parent=11 // pred_region
        _
      $region40: #{decoder_forward.3} parent=11 // pred_fallthru
        _
      // Predicated region
      $region41: #{decoder_forward.3} parent=11 // pred_check
        %p528 = pneg %p298
      $region42: #{decoder_forward.3} parent=11 // pred_check_branch
        %530 = sbr.rel (%p528) target = $region44
      $region43: #{decoder_forward.3} parent=11 // pred_region
        _
      $region44: #{decoder_forward.3} parent=11 // pred_fallthru
        _
      // Predicated region
      $region45: #{decoder_forward.3} parent=11 // pred_check
        %p531 = pneg %p319
      $region46: #{decoder_forward.3} parent=11 // pred_check_branch
        %533 = sbr.rel (%p531) target = $region48
      $region47: #{decoder_forward.3} parent=11 // pred_region
        _
      $region48: #{decoder_forward.3} parent=11 // pred_fallthru
        _
      // Predicated region
      $region49: #{decoder_forward.3} parent=11 // pred_check
        %p534 = pneg %p340
      $region50: #{decoder_forward.3} parent=11 // pred_check_branch
        %536 = sbr.rel (%p534) target = $region52
      $region51: #{decoder_forward.3} parent=11 // pred_region
        _
      $region52: #{decoder_forward.3} parent=11 // pred_fallthru
        _
      // Predicated region
      $region53: #{decoder_forward.3} parent=11 // pred_check
        %p537 = pneg %p361
      $region54: #{decoder_forward.3} parent=11 // pred_check_branch
        %539 = sbr.rel (%p537) target = $region56
      $region55: #{decoder_forward.3} parent=11 // pred_region
        _
      $region56: #{decoder_forward.3} parent=11 // pred_fallthru
        _
      // Predicated region
      $region57: #{decoder_forward.3} parent=11 // pred_check
        %p540 = pneg %p382
      $region58: #{decoder_forward.3} parent=11 // pred_check_branch
        %542 = sbr.rel (%p540) target = $region60
      $region59: #{decoder_forward.3} parent=11 // pred_region
        _
      $region60: #{decoder_forward.3} parent=11 // pred_fallthru
        _
      // Predicated region
      $region61: #{decoder_forward.3} parent=11 // pred_check
        %p543 = pneg %p403
      $region62: #{decoder_forward.3} parent=11 // pred_check_branch
        %545 = sbr.rel (%p543) target = $region64
      $region63: #{decoder_forward.3} parent=11 // pred_region
        _
      $region64: #{decoder_forward.3} parent=11 // pred_fallthru
        _
      // Predicated region
      $region65: #{decoder_forward.3} parent=11 // pred_check
        %p546 = pneg %p424
      $region66: #{decoder_forward.3} parent=11 // pred_check_branch
        %548 = sbr.rel (%p546) target = $region68
      $region67: #{decoder_forward.3} parent=11 // pred_region
        _
      $region68: #{decoder_forward.3} parent=11 // pred_fallthru
        _
      // Predicated region
      $region69: #{decoder_forward.3} parent=11 // pred_check
        %p549 = pneg %p445
      $region70: #{decoder_forward.3} parent=11 // pred_check_branch
        %551 = sbr.rel (%p549) target = $region72
      $region71: #{decoder_forward.3} parent=11 // pred_region
        _
      $region72: #{decoder_forward.3} parent=11 // pred_fallthru
        _
      // Predicated region
      $region73: #{decoder_forward.3} parent=11 // pred_check
        %p552 = pneg %p466
      $region74: #{decoder_forward.3} parent=11 // pred_check_branch
        %554 = sbr.rel (%p552) target = $region76
      $region75: #{decoder_forward.3} parent=11 // pred_region
        _
      $region76: #{decoder_forward.3} parent=11 // pred_fallthru
        _
    $region12: #{decoder_forward.3} parent=5 // pred_fallthru
      _
    %p555 = scmp.lt.s32.totalorder %s26, 2
    // Predicated region
    $region77: #{decoder_forward.3} parent=5 // pred_check
      %p556 = pneg %p555
    $region78: #{decoder_forward.3} parent=5 // pred_check_branch
      %558 = sbr.rel (%p556) target = $region80
    $region79: #{decoder_forward.3} parent=5 // pred_region
      // Predicated region
      $region81: #{decoder_forward.3} parent=79 // pred_check
        %p559 = pneg %p46
      $region82: #{decoder_forward.3} parent=79 // pred_check_branch
        %561 = sbr.rel (%p559) target = $region84
      $region83: #{decoder_forward.3} parent=79 // pred_region
        %p562 = scmp.lt.s32.totalorder %s26, 1
        %s563 = scalar_select %p562, %s26, 1
        %s564 = smul.addr %s563, 8
        %s565 = scalar_lea.vmem %s0, %s564
      $region84: #{decoder_forward.3} parent=79 // pred_fallthru
        _
      // Predicated region
      $region85: #{decoder_forward.3} parent=79 // pred_check
        %p566 = pneg %p72
      $region86: #{decoder_forward.3} parent=79 // pred_check_branch
        %568 = sbr.rel (%p566) target = $region88
      $region87: #{decoder_forward.3} parent=79 // pred_region
        %p569 = scmp.lt.s32.totalorder %s26, 1
        %s570 = scalar_select %p569, %s26, 1
        %s571 = smul.addr %s570, 4
        %s572 = scalar_lea.vmem %s1, %s571
      $region88: #{decoder_forward.3} parent=79 // pred_fallthru
        _
      // Predicated region
      $region89: #{decoder_forward.3} parent=79 // pred_check
        %p573 = pneg %p98
      $region90: #{decoder_forward.3} parent=79 // pred_check_branch
        %575 = sbr.rel (%p573) target = $region92
      $region91: #{decoder_forward.3} parent=79 // pred_region
        %p576 = scmp.lt.s32.totalorder %s26, 1
        %s577 = scalar_select %p576, %s26, 1
        %s578 = smul.addr %s577, 2
        %s579 = scalar_lea.vmem %s2, %s578
      $region92: #{decoder_forward.3} parent=79 // pred_fallthru
        _
      // Predicated region
      $region93: #{decoder_forward.3} parent=79 // pred_check
        %p580 = pneg %p124
      $region94: #{decoder_forward.3} parent=79 // pred_check_branch
        %582 = sbr.rel (%p580) target = $region96
      $region95: #{decoder_forward.3} parent=79 // pred_region
        %p583 = scmp.lt.s32.totalorder %s26, 1
        %s584 = scalar_select %p583, %s26, 1
        %s585 = smul.addr %s584, 2
        %s586 = scalar_lea.vmem %s3, %s585
      $region96: #{decoder_forward.3} parent=79 // pred_fallthru
        _
    $region80: #{decoder_forward.3} parent=5 // pred_fallthru
      _
    %p587 = scmp.le.s32.totalorder 1, %s26
    %p588 = scmp.lt.s32.totalorder %s26, 3
    %p589 = pnand %p587, %p588
    %p590 = pneg %p589
    // Predicated region
    $region97: #{decoder_forward.3} parent=5 // pred_check
      _
    $region98: #{decoder_forward.3} parent=5 // pred_check_branch
      %592 = sbr.rel (%p589) target = $region100
    $region99: #{decoder_forward.3} parent=5 // pred_region
      %s593 = ssub.s32 %s26, 1
      %p594 = scmp.lt.s32.totalorder %s31, 1
      %s595 = scalar_select %p594, %s31, 1
      %s596 = smul.addr %s595, 8
      %s597 = scalar_lea.vmem %s0, %s596
      %p598 = pneg %p52
      %p599 = pneg %p49
      %p600 = scmp.lt.s32.totalorder %s31, 1
      %s601 = scalar_select %p600, %s31, 1
      %s602 = smul.addr %s601, 4
      %s603 = scalar_lea.vmem %s1, %s602
      %p604 = pneg %p78
      %p605 = pneg %p75
      %p606 = scmp.lt.s32.totalorder %s31, 1
      %s607 = scalar_select %p606, %s31, 1
      %s608 = smul.addr %s607, 2
      %s609 = scalar_lea.vmem %s2, %s608
      %p610 = pneg %p104
      %p611 = pneg %p101
      %p612 = scmp.lt.s32.totalorder %s31, 1
      %s613 = scalar_select %p612, %s31, 1
      %s614 = smul.addr %s613, 2
      %s615 = scalar_lea.vmem %s3, %s614
      %p616 = pneg %p130
      %p617 = pneg %p127
      %p618 = pneg %p151
      %p619 = pneg %p148
      %p620 = pneg %p172
      %p621 = pneg %p169
      %p622 = pneg %p193
      %p623 = pneg %p190
      %p624 = pneg %p214
      %p625 = pneg %p211
      %p626 = pneg %p235
      %p627 = pneg %p232
      %p628 = pneg %p256
      %p629 = pneg %p253
      %p630 = pneg %p277
      %p631 = pneg %p274
      %p632 = pneg %p298
      %p633 = pneg %p295
      %p634 = pneg %p319
      %p635 = pneg %p316
      %p636 = pneg %p340
      %p637 = pneg %p337
      %p638 = pneg %p361
      %p639 = pneg %p358
      %p640 = pneg %p382
      %p641 = pneg %p379
      %p642 = pneg %p403
      %p643 = pneg %p400
      %p644 = pneg %p424
      %p645 = pneg %p421
      %p646 = pneg %p445
      %p647 = pneg %p442
      %p648 = pneg %p466
      %p649 = pneg %p463
      %p650 = pneg %p492
      %p651 = pneg %p489
      %p652 = scmp.lt.s32.totalorder %s31, 1
      %s653 = scalar_select %p652, %s31, 1
      %s654 = smul.addr %s653, 8
      %s655 = scalar_lea.vmem %s20, %s654
      %p656 = scmp.lt.s32.totalorder %s31, 1
      %s657 = scalar_select %p656, %s31, 1
      %s658 = smul.addr %s657, 8
      %s659 = scalar_lea.vmem %s0, %s658
      %p660 = scmp.lt.s32.totalorder %s31, 1
      %s661 = scalar_select %p660, %s31, 1
      %s662 = smul.addr %s661, 4
      %s663 = scalar_lea.vmem %s1, %s662
      %p664 = scmp.lt.s32.totalorder %s31, 1
      %s665 = scalar_select %p664, %s31, 1
      %s666 = smul.addr %s665, 2
      %s667 = scalar_lea.vmem %s2, %s666
      %p668 = scmp.lt.s32.totalorder %s31, 1
      %s669 = scalar_select %p668, %s31, 1
      %s670 = smul.addr %s669, 2
      %s671 = scalar_lea.vmem %s3, %s670
      %p672 = scmp.lt.s32.totalorder %s31, 1
      %s673 = scalar_select %p672, %s31, 1
      %s674 = smul.addr %s673, 8
      %s675 = scalar_lea.vmem %s20, %s674
      %v679 = vld [vmem:[%s659] sm:$0xff]
      %v680 = vld [vmem:[%s663] sm:$0xf]
      %v681 = vld [vmem:[%s667] sm:$0x3]
      %vm682 = vnez %v681
      %v683 = vld [vmem:[%s671] sm:$0x3]
      %vm684 = vnez %v683
      %v685 = vld [vmem:[%s18] sm:$0x7]
      %v686 = vld [vmem:[%s19] sm:$0x7]
      %v687 = vpack.c.bf16 %v679, %v679
      %v688 = vld [vmem:[%s4] sm:$0xf]
      %v689 = vld [vmem:[%s4 + $0x4] sm:$0xf]
      %v690 = vld [vmem:[%s4 + $0x8] sm:$0xf]
      %v691 = vld [vmem:[%s4 + $0xc] sm:$0xf]
      %v692 = vld [vmem:[%s5] sm:$0x1]
      %v694 = vperm.slane %v692, 0
      %v700 = vunpack.c.l.b16 %v688
      %v701 = vunpack.c.l.b16 %v689
      %v702 = vunpack.c.l.b16 %v690
      %v703 = vunpack.c.l.b16 %v691
      %v704 = vpack.c.b16 %v701, %v700
      %v705 = vpack.c.b16 %v703, %v702
      %vm708 = vcmask 261120
      %v710 = vsel %vm708, %v687, 0
      %712 = vmatpush.bf16.msra.mxu0 0
      %713 = vmatpush.bf16.msra.mxu0 0
      %714 = vmatpush.bf16.msra.mxu0 0
      %715 = vmatpush.bf16.msra.mxu0 0
      %716 = vmatpush.bf16.msra.mxu0 0
      %717 = vmatpush.bf16.msra.mxu0 0
      %718 = vmatpush.bf16.msra.mxu0 %v705
      %719 = vmatpush.bf16.msra.mxu0 %v704
      %720 = vmatmul.bf16.gmra.mxu0 %v710
      %v721 = vpop.f32.mrf.mxu0
      %v722 = vadd.f32 %v694, %v721
      %v723 = vpop.f32.mrf.mxu0
      %724 = vdwg.mxu0
      %v725 = vld [vmem:[%s7] sm:$0x1]
      %v726 = vpack.c.bf16 %v722, %v722
      %728 = vrot.lane.b32.xlu0 %v726, 96
      %v729 = vpop.permute.xlu0 %728
      %vm730 = vcmask 64512
      %v732 = vsel %vm730, %v726, 0
      %v735 = vsel %vm730, %v729, 0
      %737 = vmatpush.bf16.xpose.msra.mxu0 0
      %738 = vmatpush.bf16.xpose.msra.mxu0 0
      %739 = vmatpush.bf16.xpose.msra.mxu0 0
      %740 = vmatpush.bf16.xpose.msra.mxu0 0
      %741 = vmatpush.bf16.xpose.msra.mxu0 0
      %742 = vmatpush.bf16.xpose.msra.mxu0 0
      %743 = vmatpush.bf16.xpose.msra.mxu0 0
      %744 = vmatpush.bf16.xpose.msra.mxu0 %v735
      %745 = vmatmul.bf16.gmra.mxu0 %v732
      %v746 = vpop.f32.mrf.mxu0
      %v747 = vadd.f32 0.0, %v746
      %v748 = vpop.f32.mrf.mxu0
      %749 = vdwg.mxu0
      %v750 = vmul.f32 %v747, 0.35355338
      %v751 = vsel %vm682, 16843009, 0
      %v752 = vunpack.c.0.s8 %v751
      %vm753 = vcmp.ne.s32.totalorder %v752, 0
      %v754 = vsel %vm753, %v750, -10000.0
      %v755 = vsel %vm730, %v754, -inf
      %756 = vmax.xlane.f32.xlu0 %v755
      %v757 = vpop.xlane.xlu0 %756
      %v758 = vsub.f32 %v754, %v757
      %v759 = vmul.f32 %v758, 1.442695
      %v760 = vpow.pop %v759
      %v761 = vsel %vm730, %v760, 0.0
      %762 = vadd.xlane.f32.xlu0 %v761
      %v763 = vpop.xlane.xlu0 %762
      %v764 = vrcp.pop %v763
      %v765 = vmul.f32 %v760, %v764
      %v766 = vpack.c.bf16 %v765, %v765
      %767 = vrot.lane.b32.xlu0 %v726, 64
      %v768 = vpop.permute.xlu0 %767
      %v770 = vsel %vm730, %v766, 0
      %vm772 = vcmask 1043456
      %v774 = vsel %vm772, %v768, 0
      %776 = vmatpush.bf16.msra.mxu0 0
      %777 = vmatpush.bf16.msra.mxu0 0
      %778 = vmatpush.bf16.msra.mxu0 0
      %779 = vmatpush.bf16.msra.mxu0 0
      %780 = vmatpush.bf16.msra.mxu0 0
      %781 = vmatpush.bf16.msra.mxu0 0
      %782 = vmatpush.bf16.msra.mxu0 0
      %783 = vmatpush.bf16.msra.mxu0 %v774
      %784 = vmatmul.bf16.gmra.mxu0 %v770
      %v785 = vpop.f32.mrf.mxu0
      %v786 = vadd.f32 0.0, %v785
      %v787 = vpop.f32.mrf.mxu0
      %788 = vdwg.mxu0
      %789 = vst.msk [vmem:[#allocation2] sm:$0xff] %vm730, %v786
      %790 = vrot.lane.b32.xlu0 %v726, 120
      %v791 = vpop.permute.xlu0 %790
      %792 = vrot.lane.b32.xlu0 %v726, 88
      %v793 = vpop.permute.xlu0 %792
      %v795 = vsel %vm730, %v791, 0
      %v798 = vsel %vm730, %v793, 0
      %800 = vmatpush.bf16.xpose.msra.mxu0 0
      %801 = vmatpush.bf16.xpose.msra.mxu0 0
      %802 = vmatpush.bf16.xpose.msra.mxu0 0
      %803 = vmatpush.bf16.xpose.msra.mxu0 0
      %804 = vmatpush.bf16.xpose.msra.mxu0 0
      %805 = vmatpush.bf16.xpose.msra.mxu0 0
      %806 = vmatpush.bf16.xpose.msra.mxu0 0
      %807 = vmatpush.bf16.xpose.msra.mxu0 %v798
      %808 = vmatmul.bf16.gmra.mxu0 %v795
      %v809 = vpop.f32.mrf.mxu0
      %v810 = vadd.f32 0.0, %v809
      %v811 = vpop.f32.mrf.mxu0
      %812 = vdwg.mxu0
      %v813 = vmul.f32 %v810, 0.35355338
      %v814 = vsel %vm753, %v813, -10000.0
      %v815 = vsel %vm730, %v814, -inf
      %816 = vmax.xlane.f32.xlu0 %v815
      %v817 = vpop.xlane.xlu0 %816
      %v818 = vsub.f32 %v814, %v817
      %v819 = vmul.f32 %v818, 1.442695
      %v820 = vpow.pop %v819
      %v821 = vsel %vm730, %v820, 0.0
      %822 = vadd.xlane.f32.xlu0 %v821
      %v823 = vpop.xlane.xlu0 %822
      %v824 = vrcp.pop %v823
      %v825 = vmul.f32 %v820, %v824
      %v826 = vpack.c.bf16 %v825, %v825
      %827 = vrot.lane.b32.xlu0 %v726, 56
      %v828 = vpop.permute.xlu0 %827
      %v830 = vsel %vm730, %v826, 0
      %v833 = vsel %vm772, %v828, 0
      %835 = vmatpush.bf16.msra.mxu0 0
      %836 = vmatpush.bf16.msra.mxu0 0
      %837 = vmatpush.bf16.msra.mxu0 0
      %838 = vmatpush.bf16.msra.mxu0 0
      %839 = vmatpush.bf16.msra.mxu0 0
      %840 = vmatpush.bf16.msra.mxu0 0
      %841 = vmatpush.bf16.msra.mxu0 0
      %842 = vmatpush.bf16.msra.mxu0 %v833
      %843 = vmatmul.bf16.gmra.mxu0 %v830
      %v844 = vpop.f32.mrf.mxu0
      %v845 = vadd.f32 0.0, %v844
      %v846 = vpop.f32.mrf.mxu0
      %847 = vdwg.mxu0
      %849 = vrot.lane.b32.xlu0 %v845, 8
      %v850 = vpop.permute.xlu0 %849
      %vm852 = vcmask 130112
      %853 = vst.msk [vmem:[#allocation2] sm:$0xff] %vm852, %v850
      %854 = vrot.lane.b32.xlu0 %v726, 112
      %v855 = vpop.permute.xlu0 %854
      %856 = vrot.lane.b32.xlu0 %v726, 80
      %v857 = vpop.permute.xlu0 %856
      %v859 = vsel %vm730, %v855, 0
      %v862 = vsel %vm730, %v857, 0
      %864 = vmatpush.bf16.xpose.msra.mxu0 0
      %865 = vmatpush.bf16.xpose.msra.mxu0 0
      %866 = vmatpush.bf16.xpose.msra.mxu0 0
      %867 = vmatpush.bf16.xpose.msra.mxu0 0
      %868 = vmatpush.bf16.xpose.msra.mxu0 0
      %869 = vmatpush.bf16.xpose.msra.mxu0 0
      %870 = vmatpush.bf16.xpose.msra.mxu0 0
      %871 = vmatpush.bf16.xpose.msra.mxu0 %v862
      %872 = vmatmul.bf16.gmra.mxu0 %v859
      %v873 = vpop.f32.mrf.mxu0
      %v874 = vadd.f32 0.0, %v873
      %v875 = vpop.f32.mrf.mxu0
      %876 = vdwg.mxu0
      %v877 = vmul.f32 %v874, 0.35355338
      %v878 = vsel %vm753, %v877, -10000.0
      %v879 = vsel %vm730, %v878, -inf
      %880 = vmax.xlane.f32.xlu0 %v879
      %v881 = vpop.xlane.xlu0 %880
      %v882 = vsub.f32 %v878, %v881
      %v883 = vmul.f32 %v882, 1.442695
      %v884 = vpow.pop %v883
      %v885 = vsel %vm730, %v884, 0.0
      %886 = vadd.xlane.f32.xlu0 %v885
      %v887 = vpop.xlane.xlu0 %886
      %v888 = vrcp.pop %v887
      %v889 = vmul.f32 %v884, %v888
      %v890 = vpack.c.bf16 %v889, %v889
      %891 = vrot.lane.b32.xlu0 %v726, 48
      %v892 = vpop.permute.xlu0 %891
      %v894 = vsel %vm730, %v890, 0
      %v897 = vsel %vm772, %v892, 0
      %899 = vmatpush.bf16.msra.mxu0 0
      %900 = vmatpush.bf16.msra.mxu0 0
      %901 = vmatpush.bf16.msra.mxu0 0
      %902 = vmatpush.bf16.msra.mxu0 0
      %903 = vmatpush.bf16.msra.mxu0 0
      %904 = vmatpush.bf16.msra.mxu0 0
      %905 = vmatpush.bf16.msra.mxu0 0
      %906 = vmatpush.bf16.msra.mxu0 %v897
      %907 = vmatmul.bf16.gmra.mxu0 %v894
      %v908 = vpop.f32.mrf.mxu0
      %v909 = vadd.f32 0.0, %v908
      %v910 = vpop.f32.mrf.mxu0
      %911 = vdwg.mxu0
      %913 = vrot.lane.b32.xlu0 %v909, 16
      %v914 = vpop.permute.xlu0 %913
      %vm916 = vcmask 195712
      %917 = vst.msk [vmem:[#allocation2] sm:$0xff] %vm916, %v914
      %918 = vrot.lane.b32.xlu0 %v726, 104
      %v919 = vpop.permute.xlu0 %918
      %920 = vrot.lane.b32.xlu0 %v726, 72
      %v921 = vpop.permute.xlu0 %920
      %v923 = vsel %vm730, %v919, 0
      %v926 = vsel %vm730, %v921, 0
      %928 = vmatpush.bf16.xpose.msra.mxu0 0
      %929 = vmatpush.bf16.xpose.msra.mxu0 0
      %930 = vmatpush.bf16.xpose.msra.mxu0 0
      %931 = vmatpush.bf16.xpose.msra.mxu0 0
      %932 = vmatpush.bf16.xpose.msra.mxu0 0
      %933 = vmatpush.bf16.xpose.msra.mxu0 0
      %934 = vmatpush.bf16.xpose.msra.mxu0 0
      %935 = vmatpush.bf16.xpose.msra.mxu0 %v926
      %936 = vmatmul.bf16.gmra.mxu0 %v923
      %v937 = vpop.f32.mrf.mxu0
      %v938 = vadd.f32 0.0, %v937
      %v939 = vpop.f32.mrf.mxu0
      %940 = vdwg.mxu0
      %v941 = vmul.f32 %v938, 0.35355338
      %v942 = vsel %vm753, %v941, -10000.0
      %v943 = vsel %vm730, %v942, -inf
      %944 = vmax.xlane.f32.xlu0 %v943
      %v945 = vpop.xlane.xlu0 %944
      %v946 = vsub.f32 %v942, %v945
      %v947 = vmul.f32 %v946, 1.442695
      %v948 = vpow.pop %v947
      %v949 = vsel %vm730, %v948, 0.0
      %950 = vadd.xlane.f32.xlu0 %v949
      %v951 = vpop.xlane.xlu0 %950
      %v952 = vrcp.pop %v951
      %v953 = vmul.f32 %v948, %v952
      %v954 = vpack.c.bf16 %v953, %v953
      %955 = vrot.lane.b32.xlu0 %v726, 40
      %v956 = vpop.permute.xlu0 %955
      %v958 = vsel %vm730, %v954, 0
      %v961 = vsel %vm772, %v956, 0
      %963 = vmatpush.bf16.msra.mxu0 0
      %964 = vmatpush.bf16.msra.mxu0 0
      %965 = vmatpush.bf16.msra.mxu0 0
      %966 = vmatpush.bf16.msra.mxu0 0
      %967 = vmatpush.bf16.msra.mxu0 0
      %968 = vmatpush.bf16.msra.mxu0 0
      %969 = vmatpush.bf16.msra.mxu0 0
      %970 = vmatpush.bf16.msra.mxu0 %v961
      %971 = vmatmul.bf16.gmra.mxu0 %v958
      %v972 = vpop.f32.mrf.mxu0
      %v973 = vadd.f32 0.0, %v972
      %v974 = vpop.f32.mrf.mxu0
      %975 = vdwg.mxu0
      %977 = vrot.lane.b32.xlu0 %v973, 24
      %v978 = vpop.permute.xlu0 %977
      %vm980 = vcmask 261312
      %981 = vst.msk [vmem:[#allocation2] sm:$0xff] %vm980, %v978
      %v982 = vld [vmem:[#allocation2] sm:$0xff]
      %v983 = vpack.c.bf16 %v982, %v982
      %v984 = vld [vmem:[%s6] sm:$0xf]
      %v985 = vld [vmem:[%s6 + $0x4] sm:$0xf]
      %v986 = vld [vmem:[%s6 + $0x8] sm:$0xf]
      %v987 = vld [vmem:[%s6 + $0xc] sm:$0xf]
      %v989 = vperm.slane %v725, 0
      %v995 = vunpack.c.l.b16 %v984
      %v996 = vunpack.c.l.b16 %v985
      %v997 = vunpack.c.l.b16 %v986
      %v998 = vunpack.c.l.b16 %v987
      %v999 = vpack.c.b16 %v996, %v995
      %v1000 = vpack.c.b16 %v998, %v997
      %v1004 = vsel %vm708, %v983, 0
      %1006 = vmatpush.bf16.msra.mxu0 0
      %1007 = vmatpush.bf16.msra.mxu0 0
      %1008 = vmatpush.bf16.msra.mxu0 0
      %1009 = vmatpush.bf16.msra.mxu0 0
      %1010 = vmatpush.bf16.msra.mxu0 0
      %1011 = vmatpush.bf16.msra.mxu0 0
      %1012 = vmatpush.bf16.msra.mxu0 %v1000
      %1013 = vmatpush.bf16.msra.mxu0 %v999
      %1014 = vmatmul.bf16.gmra.mxu0 %v1004
      %v1015 = vpop.f32.mrf.mxu0
      %v1016 = vadd.f32 %v989, %v1015
      %v1017 = vpop.f32.mrf.mxu0
      %1018 = vdwg.mxu0
      %v1019 = vadd.f32 %v1016, %v679
      %v1020 = vsel %vm708, %v1019, 0.0
      %1021 = vadd.xlane.f32.xlu0 %v1020
      %v1022 = vpop.xlane.xlu0 %1021
      %v1023 = vrcp.pop 32.0
      %v1024 = vmul.f32 32.0, %v1023
      %v1025 = vsub.f32 1.0, %v1024
      %v1026 = vmul.f32 %v1023, %v1025
      %v1027 = vadd.f32 %v1023, %v1026
      %vm1028 = vweird.f32 %v1023
      %v1029 = vsel %vm1028, %v1023, %v1027
      %v1030 = vmul.f32 %v1022, %v1029
      %v1031 = vsub.f32 %v1019, %v1030
      %v1032 = vmul.f32 %v1031, %v1031
      %v1033 = vsel %vm708, %v1032, 0.0
      %1034 = vadd.xlane.f32.xlu0 %v1033
      %v1035 = vpop.xlane.xlu0 %1034
      %v1036 = vmul.f32 %v1035, %v1029
      %v1037 = vadd.f32 %v1036, 1e-12
      %v1038 = vrsqrt.pop %v1037
      %v1039 = vmul.f32 %v1038, %v1037
      %v1040 = vmul.f32 %v1039, %v1038
      %v1041 = vmul.f32 0.5, %v1040
      %v1042 = vsub.f32 1.5, %v1041
      %v1043 = vmul.f32 %v1038, %v1042
      %vm1044 = vweird.f32 %v1037
      %vm1045 = vweird.f32 %v1038
      %vm1046 = vmor %vm1044, %vm1045
      %v1047 = vsel %vm1046, %v1038, %v1043
      %v1048 = vmul.f32 %v1031, %v1047
      %v1049 = vperm.slane %v685, 0
      %v1050 = vmul.f32 %v1048, %v1049
      %v1051 = vperm.slane %v686, 0
      %v1052 = vadd.f32 %v1050, %v1051
      %v1053 = vpack.c.bf16 %v1052, %v1052
      %v1054 = vld [vmem:[%s8] sm:$0xf]
      %v1055 = vld [vmem:[%s8 + $0x4] sm:$0xf]
      %v1056 = vld [vmem:[%s8 + $0x8] sm:$0xf]
      %v1057 = vld [vmem:[%s8 + $0xc] sm:$0xf]
      %v1058 = vld [vmem:[%s9] sm:$0x1]
      %v1060 = vperm.slane %v1058, 0
      %v1066 = vunpack.c.l.b16 %v1054
      %v1067 = vunpack.c.l.b16 %v1055
      %v1068 = vunpack.c.l.b16 %v1056
      %v1069 = vunpack.c.l.b16 %v1057
      %v1070 = vpack.c.b16 %v1067, %v1066
      %v1071 = vpack.c.b16 %v1069, %v1068
      %v1075 = vsel %vm708, %v1053, 0
      %1077 = vmatpush.bf16.msra.mxu0 0
      %1078 = vmatpush.bf16.msra.mxu0 0
      %1079 = vmatpush.bf16.msra.mxu0 0
      %1080 = vmatpush.bf16.msra.mxu0 0
      %1081 = vmatpush.bf16.msra.mxu0 0
      %1082 = vmatpush.bf16.msra.mxu0 0
      %1083 = vmatpush.bf16.msra.mxu0 %v1071
      %1084 = vmatpush.bf16.msra.mxu0 %v1070
      %1085 = vmatmul.bf16.gmra.mxu0 %v1075
      %v1086 = vpop.f32.mrf.mxu0
      %v1087 = vadd.f32 %v1060, %v1086
      %v1088 = vpop.f32.mrf.mxu0
      %1089 = vdwg.mxu0
      %v1090 = vld [vmem:[%s10] sm:$0xf]
      %v1091 = vld [vmem:[%s10 + $0x4] sm:$0xf]
      %v1092 = vld [vmem:[%s10 + $0x8] sm:$0xf]
      %v1093 = vld [vmem:[%s10 + $0xc] sm:$0xf]
      %v1094 = vld [vmem:[%s11] sm:$0x1]
      %v1096 = vperm.slane %v1094, 0
      %v1102 = vunpack.c.l.b16 %v1090
      %v1103 = vunpack.c.l.b16 %v1091
      %v1104 = vunpack.c.l.b16 %v1092
      %v1105 = vunpack.c.l.b16 %v1093
      %v1106 = vpack.c.b16 %v1103, %v1102
      %v1107 = vpack.c.b16 %v1105, %v1104
      %v1111 = vsel %vm708, %v680, 0
      %1113 = vmatpush.bf16.msra.mxu0 0
      %1114 = vmatpush.bf16.msra.mxu0 0
      %1115 = vmatpush.bf16.msra.mxu0 0
      %1116 = vmatpush.bf16.msra.mxu0 0
      %1117 = vmatpush.bf16.msra.mxu0 0
      %1118 = vmatpush.bf16.msra.mxu0 0
      %1119 = vmatpush.bf16.msra.mxu0 %v1107
      %1120 = vmatpush.bf16.msra.mxu0 %v1106
      %1121 = vmatmul.bf16.gmra.mxu0 %v1111
      %v1122 = vpop.f32.mrf.mxu0
      %v1123 = vadd.f32 %v1096, %v1122
      %v1124 = vpop.f32.mrf.mxu0
      %1125 = vdwg.mxu0
      %v1126 = vld [vmem:[%s13] sm:$0x1]
      %v1127 = vpack.c.bf16 %v1087, %v1087
      %v1128 = vpack.c.bf16 %v1123, %v1123
      %v1130 = vsel %vm730, %v1127, 0
      %v1133 = vsel %vm730, %v1128, 0
      %1135 = vmatpush.bf16.xpose.msra.mxu0 0
      %1136 = vmatpush.bf16.xpose.msra.mxu0 0
      %1137 = vmatpush.bf16.xpose.msra.mxu0 0
      %1138 = vmatpush.bf16.xpose.msra.mxu0 0
      %1139 = vmatpush.bf16.xpose.msra.mxu0 0
      %1140 = vmatpush.bf16.xpose.msra.mxu0 0
      %1141 = vmatpush.bf16.xpose.msra.mxu0 0
      %1142 = vmatpush.bf16.xpose.msra.mxu0 %v1133
      %1143 = vmatmul.bf16.gmra.mxu0 %v1130
      %v1144 = vpop.f32.mrf.mxu0
      %v1145 = vadd.f32 0.0, %v1144
      %v1146 = vpop.f32.mrf.mxu0
      %1147 = vdwg.mxu0
      %v1148 = vmul.f32 %v1145, 0.35355338
      %v1149 = vsel %vm684, 16843009, 0
      %v1150 = vunpack.c.0.s8 %v1149
      %vm1151 = vcmp.ne.s32.totalorder %v1150, 0
      %v1152 = vsel %vm1151, %v1148, -10000.0
      %v1153 = vsel %vm730, %v1152, -inf
      %1154 = vmax.xlane.f32.xlu0 %v1153
      %v1155 = vpop.xlane.xlu0 %1154
      %v1156 = vsub.f32 %v1152, %v1155
      %v1157 = vmul.f32 %v1156, 1.442695
      %v1158 = vpow.pop %v1157
      %v1159 = vsel %vm730, %v1158, 0.0
      %1160 = vadd.xlane.f32.xlu0 %v1159
      %v1161 = vpop.xlane.xlu0 %1160
      %v1162 = vrcp.pop %v1161
      %v1163 = vmul.f32 %v1158, %v1162
      %v1164 = vpack.c.bf16 %v1163, %v1163
      %1166 = vrot.lane.b32.xlu0 %v1128, 96
      %v1167 = vpop.permute.xlu0 %1166
      %v1169 = vsel %vm730, %v1164, 0
      %v1172 = vsel %vm772, %v1167, 0
      %1174 = vmatpush.bf16.msra.mxu0 0
      %1175 = vmatpush.bf16.msra.mxu0 0
      %1176 = vmatpush.bf16.msra.mxu0 0
      %1177 = vmatpush.bf16.msra.mxu0 0
      %1178 = vmatpush.bf16.msra.mxu0 0
      %1179 = vmatpush.bf16.msra.mxu0 0
      %1180 = vmatpush.bf16.msra.mxu0 0
      %1181 = vmatpush.bf16.msra.mxu0 %v1172
      %1182 = vmatmul.bf16.gmra.mxu0 %v1169
      %v1183 = vpop.f32.mrf.mxu0
      %v1184 = vadd.f32 0.0, %v1183
      %v1185 = vpop.f32.mrf.mxu0
      %1186 = vdwg.mxu0
      %1187 = vst.msk [vmem:[#allocation2] sm:$0xff] %vm730, %v1184
      %1189 = vrot.lane.b32.xlu0 %v1127, 120
      %v1190 = vpop.permute.xlu0 %1189
      %1191 = vrot.lane.b32.xlu0 %v1128, 120
      %v1192 = vpop.permute.xlu0 %1191
      %v1194 = vsel %vm730, %v1190, 0
      %v1197 = vsel %vm730, %v1192, 0
      %1199 = vmatpush.bf16.xpose.msra.mxu0 0
      %1200 = vmatpush.bf16.xpose.msra.mxu0 0
      %1201 = vmatpush.bf16.xpose.msra.mxu0 0
      %1202 = vmatpush.bf16.xpose.msra.mxu0 0
      %1203 = vmatpush.bf16.xpose.msra.mxu0 0
      %1204 = vmatpush.bf16.xpose.msra.mxu0 0
      %1205 = vmatpush.bf16.xpose.msra.mxu0 0
      %1206 = vmatpush.bf16.xpose.msra.mxu0 %v1197
      %1207 = vmatmul.bf16.gmra.mxu0 %v1194
      %v1208 = vpop.f32.mrf.mxu0
      %v1209 = vadd.f32 0.0, %v1208
      %v1210 = vpop.f32.mrf.mxu0
      %1211 = vdwg.mxu0
      %v1212 = vmul.f32 %v1209, 0.35355338
      %v1213 = vsel %vm1151, %v1212, -10000.0
      %v1214 = vsel %vm730, %v1213, -inf
      %1215 = vmax.xlane.f32.xlu0 %v1214
      %v1216 = vpop.xlane.xlu0 %1215
      %v1217 = vsub.f32 %v1213, %v1216
      %v1218 = vmul.f32 %v1217, 1.442695
      %v1219 = vpow.pop %v1218
      %v1220 = vsel %vm730, %v1219, 0.0
      %1221 = vadd.xlane.f32.xlu0 %v1220
      %v1222 = vpop.xlane.xlu0 %1221
      %v1223 = vrcp.pop %v1222
      %v1224 = vmul.f32 %v1219, %v1223
      %v1225 = vpack.c.bf16 %v1224, %v1224
      %1226 = vrot.lane.b32.xlu0 %v1128, 88
      %v1227 = vpop.permute.xlu0 %1226
      %v1229 = vsel %vm730, %v1225, 0
      %v1232 = vsel %vm772, %v1227, 0
      %1234 = vmatpush.bf16.msra.mxu0 0
      %1235 = vmatpush.bf16.msra.mxu0 0
      %1236 = vmatpush.bf16.msra.mxu0 0
      %1237 = vmatpush.bf16.msra.mxu0 0
      %1238 = vmatpush.bf16.msra.mxu0 0
      %1239 = vmatpush.bf16.msra.mxu0 0
      %1240 = vmatpush.bf16.msra.mxu0 0
      %1241 = vmatpush.bf16.msra.mxu0 %v1232
      %1242 = vmatmul.bf16.gmra.mxu0 %v1229
      %v1243 = vpop.f32.mrf.mxu0
      %v1244 = vadd.f32 0.0, %v1243
      %v1245 = vpop.f32.mrf.mxu0
      %1246 = vdwg.mxu0
      %1248 = vrot.lane.b32.xlu0 %v1244, 8
      %v1249 = vpop.permute.xlu0 %1248
      %1251 = vst.msk [vmem:[#allocation2] sm:$0xff] %vm852, %v1249
      %1252 = vrot.lane.b32.xlu0 %v1127, 112
      %v1253 = vpop.permute.xlu0 %1252
      %1254 = vrot.lane.b32.xlu0 %v1128, 112
      %v1255 = vpop.permute.xlu0 %1254
      %v1257 = vsel %vm730, %v1253, 0
      %v1260 = vsel %vm730, %v1255, 0
      %1262 = vmatpush.bf16.xpose.msra.mxu0 0
      %1263 = vmatpush.bf16.xpose.msra.mxu0 0
      %1264 = vmatpush.bf16.xpose.msra.mxu0 0
      %1265 = vmatpush.bf16.xpose.msra.mxu0 0
      %1266 = vmatpush.bf16.xpose.msra.mxu0 0
      %1267 = vmatpush.bf16.xpose.msra.mxu0 0
      %1268 = vmatpush.bf16.xpose.msra.mxu0 0
      %1269 = vmatpush.bf16.xpose.msra.mxu0 %v1260
      %1270 = vmatmul.bf16.gmra.mxu0 %v1257
      %v1271 = vpop.f32.mrf.mxu0
      %v1272 = vadd.f32 0.0, %v1271
      %v1273 = vpop.f32.mrf.mxu0
      %1274 = vdwg.mxu0
      %v1275 = vmul.f32 %v1272, 0.35355338
      %v1276 = vsel %vm1151, %v1275, -10000.0
      %v1277 = vsel %vm730, %v1276, -inf
      %1278 = vmax.xlane.f32.xlu0 %v1277
      %v1279 = vpop.xlane.xlu0 %1278
      %v1280 = vsub.f32 %v1276, %v1279
      %v1281 = vmul.f32 %v1280, 1.442695
      %v1282 = vpow.pop %v1281
      %v1283 = vsel %vm730, %v1282, 0.0
      %1284 = vadd.xlane.f32.xlu0 %v1283
      %v1285 = vpop.xlane.xlu0 %1284
      %v1286 = vrcp.pop %v1285
      %v1287 = vmul.f32 %v1282, %v1286
      %v1288 = vpack.c.bf16 %v1287, %v1287
      %1289 = vrot.lane.b32.xlu0 %v1128, 80
      %v1290 = vpop.permute.xlu0 %1289
      %v1292 = vsel %vm730, %v1288, 0
      %v1295 = vsel %vm772, %v1290, 0
      %1297 = vmatpush.bf16.msra.mxu0 0
      %1298 = vmatpush.bf16.msra.mxu0 0
      %1299 = vmatpush.bf16.msra.mxu0 0
      %1300 = vmatpush.bf16.msra.mxu0 0
      %1301 = vmatpush.bf16.msra.mxu0 0
      %1302 = vmatpush.bf16.msra.mxu0 0
      %1303 = vmatpush.bf16.msra.mxu0 0
      %1304 = vmatpush.bf16.msra.mxu0 %v1295
      %1305 = vmatmul.bf16.gmra.mxu0 %v1292
      %v1306 = vpop.f32.mrf.mxu0
      %v1307 = vadd.f32 0.0, %v1306
      %v1308 = vpop.f32.mrf.mxu0
      %1309 = vdwg.mxu0
      %1311 = vrot.lane.b32.xlu0 %v1307, 16
      %v1312 = vpop.permute.xlu0 %1311
      %1314 = vst.msk [vmem:[#allocation2] sm:$0xff] %vm916, %v1312
      %1315 = vrot.lane.b32.xlu0 %v1127, 104
      %v1316 = vpop.permute.xlu0 %1315
      %1317 = vrot.lane.b32.xlu0 %v1128, 104
      %v1318 = vpop.permute.xlu0 %1317
      %v1320 = vsel %vm730, %v1316, 0
      %v1323 = vsel %vm730, %v1318, 0
      %1325 = vmatpush.bf16.xpose.msra.mxu0 0
      %1326 = vmatpush.bf16.xpose.msra.mxu0 0
      %1327 = vmatpush.bf16.xpose.msra.mxu0 0
      %1328 = vmatpush.bf16.xpose.msra.mxu0 0
      %1329 = vmatpush.bf16.xpose.msra.mxu0 0
      %1330 = vmatpush.bf16.xpose.msra.mxu0 0
      %1331 = vmatpush.bf16.xpose.msra.mxu0 0
      %1332 = vmatpush.bf16.xpose.msra.mxu0 %v1323
      %1333 = vmatmul.bf16.gmra.mxu0 %v1320
      %v1334 = vpop.f32.mrf.mxu0
      %v1335 = vadd.f32 0.0, %v1334
      %v1336 = vpop.f32.mrf.mxu0
      %1337 = vdwg.mxu0
      %v1338 = vmul.f32 %v1335, 0.35355338
      %v1339 = vsel %vm1151, %v1338, -10000.0
      %v1340 = vsel %vm730, %v1339, -inf
      %1341 = vmax.xlane.f32.xlu0 %v1340
      %v1342 = vpop.xlane.xlu0 %1341
      %v1343 = vsub.f32 %v1339, %v1342
      %v1344 = vmul.f32 %v1343, 1.442695
      %v1345 = vpow.pop %v1344
      %v1346 = vsel %vm730, %v1345, 0.0
      %1347 = vadd.xlane.f32.xlu0 %v1346
      %v1348 = vpop.xlane.xlu0 %1347
      %v1349 = vrcp.pop %v1348
      %v1350 = vmul.f32 %v1345, %v1349
      %v1351 = vpack.c.bf16 %v1350, %v1350
      %1352 = vrot.lane.b32.xlu0 %v1128, 72
      %v1353 = vpop.permute.xlu0 %1352
      %v1355 = vsel %vm730, %v1351, 0
      %v1358 = vsel %vm772, %v1353, 0
      %1360 = vmatpush.bf16.msra.mxu0 0
      %1361 = vmatpush.bf16.msra.mxu0 0
      %1362 = vmatpush.bf16.msra.mxu0 0
      %1363 = vmatpush.bf16.msra.mxu0 0
      %1364 = vmatpush.bf16.msra.mxu0 0
      %1365 = vmatpush.bf16.msra.mxu0 0
      %1366 = vmatpush.bf16.msra.mxu0 0
      %1367 = vmatpush.bf16.msra.mxu0 %v1358
      %1368 = vmatmul.bf16.gmra.mxu0 %v1355
      %v1369 = vpop.f32.mrf.mxu0
      %v1370 = vadd.f32 0.0, %v1369
      %v1371 = vpop.f32.mrf.mxu0
      %1372 = vdwg.mxu0
      %1374 = vrot.lane.b32.xlu0 %v1370, 24
      %v1375 = vpop.permute.xlu0 %1374
      %1377 = vst.msk [vmem:[#allocation2] sm:$0xff] %vm980, %v1375
      %v1378 = vld [vmem:[#allocation2] sm:$0xff]
      %v1379 = vpack.c.bf16 %v1378, %v1378
      %v1380 = vld [vmem:[%s12] sm:$0xf]
      %v1381 = vld [vmem:[%s12 + $0x4] sm:$0xf]
      %v1382 = vld [vmem:[%s12 + $0x8] sm:$0xf]
      %v1383 = vld [vmem:[%s12 + $0xc] sm:$0xf]
      %v1385 = vperm.slane %v1126, 0
      %v1391 = vunpack.c.l.b16 %v1380
      %v1392 = vunpack.c.l.b16 %v1381
      %v1393 = vunpack.c.l.b16 %v1382
      %v1394 = vunpack.c.l.b16 %v1383
      %v1395 = vpack.c.b16 %v1392, %v1391
      %v1396 = vpack.c.b16 %v1394, %v1393
      %v1400 = vsel %vm708, %v1379, 0
      %1402 = vmatpush.bf16.msra.mxu0 0
      %1403 = vmatpush.bf16.msra.mxu0 0
      %1404 = vmatpush.bf16.msra.mxu0 0
      %1405 = vmatpush.bf16.msra.mxu0 0
      %1406 = vmatpush.bf16.msra.mxu0 0
      %1407 = vmatpush.bf16.msra.mxu0 0
      %1408 = vmatpush.bf16.msra.mxu0 %v1396
      %1409 = vmatpush.bf16.msra.mxu0 %v1395
      %1410 = vmatmul.bf16.gmra.mxu0 %v1400
      %v1411 = vpop.f32.mrf.mxu0
      %v1412 = vadd.f32 %v1385, %v1411
      %v1413 = vpop.f32.mrf.mxu0
      %1414 = vdwg.mxu0
      %v1415 = vadd.f32 %v1412, %v1052
      %v1416 = vsel %vm708, %v1415, 0.0
      %1417 = vadd.xlane.f32.xlu0 %v1416
      %v1418 = vpop.xlane.xlu0 %1417
      %v1419 = vmul.f32 %v1418, %v1029
      %v1420 = vsub.f32 %v1415, %v1419
      %v1421 = vmul.f32 %v1420, %v1420
      %v1422 = vsel %vm708, %v1421, 0.0
      %1423 = vadd.xlane.f32.xlu0 %v1422
      %v1424 = vpop.xlane.xlu0 %1423
      %v1425 = vmul.f32 %v1424, %v1029
      %v1426 = vadd.f32 %v1425, 1e-12
      %v1427 = vrsqrt.pop %v1426
      %v1428 = vmul.f32 %v1427, %v1426
      %v1429 = vmul.f32 %v1428, %v1427
      %v1430 = vmul.f32 0.5, %v1429
      %v1431 = vsub.f32 1.5, %v1430
      %v1432 = vmul.f32 %v1427, %v1431
      %vm1433 = vweird.f32 %v1426
      %vm1434 = vweird.f32 %v1427
      %vm1435 = vmor %vm1433, %vm1434
      %v1436 = vsel %vm1435, %v1427, %v1432
      %v1437 = vmul.f32 %v1420, %v1436
      %v1438 = vperm.slane %v685, 1
      %v1439 = vmul.f32 %v1437, %v1438
      %v1440 = vperm.slane %v686, 1
      %v1441 = vadd.f32 %v1439, %v1440
      %v1442 = vpack.c.bf16 %v1441, %v1441
      %v1443 = vld [vmem:[%s14] sm:$0xf]
      %v1444 = vld [vmem:[%s14 + $0x4] sm:$0xf]
      %v1445 = vld [vmem:[%s14 + $0x8] sm:$0xf]
      %v1446 = vld [vmem:[%s14 + $0xc] sm:$0xf]
      %v1447 = vld [vmem:[%s15] sm:$0x1]
      %v1449 = vperm.slane %v1447, 0
      %v1455 = vunpack.c.l.b16 %v1443
      %v1456 = vunpack.c.l.b16 %v1444
      %v1457 = vunpack.c.l.b16 %v1445
      %v1458 = vunpack.c.l.b16 %v1446
      %v1459 = vpack.c.b16 %v1456, %v1455
      %v1460 = vpack.c.b16 %v1458, %v1457
      %v1464 = vsel %vm708, %v1442, 0
      %1466 = vmatpush.bf16.msra.mxu0 0
      %1467 = vmatpush.bf16.msra.mxu0 0
      %1468 = vmatpush.bf16.msra.mxu0 0
      %1469 = vmatpush.bf16.msra.mxu0 0
      %1470 = vmatpush.bf16.msra.mxu0 0
      %1471 = vmatpush.bf16.msra.mxu0 0
      %1472 = vmatpush.bf16.msra.mxu0 %v1460
      %1473 = vmatpush.bf16.msra.mxu0 %v1459
      %1474 = vmatmul.bf16.gmra.mxu0 %v1464
      %v1475 = vpop.f32.mrf.mxu0
      %v1476 = vadd.f32 %v1449, %v1475
      %v1477 = vpop.f32.mrf.mxu0
      %1478 = vdwg.mxu0
      %v1479 = vmax.f32 %v1476, 0.0
      %v1480 = vpack.c.bf16 %v1479, %v1479
      %v1481 = vld [vmem:[%s16] sm:$0xf]
      %v1482 = vld [vmem:[%s16 + $0x4] sm:$0xf]
      %v1483 = vld [vmem:[%s16 + $0x8] sm:$0xf]
      %v1484 = vld [vmem:[%s16 + $0xc] sm:$0xf]
      %v1485 = vld [vmem:[%s16 + $0x10] sm:$0xf]
      %v1486 = vld [vmem:[%s16 + $0x14] sm:$0xf]
      %v1487 = vld [vmem:[%s16 + $0x18] sm:$0xf]
      %v1488 = vld [vmem:[%s16 + $0x1c] sm:$0xf]
      %v1489 = vld [vmem:[%s17] sm:$0x1]
      %v1491 = vperm.slane %v1489, 0
      %v1501 = vunpack.c.l.b16 %v1481
      %v1502 = vunpack.c.l.b16 %v1482
      %v1503 = vunpack.c.l.b16 %v1483
      %v1504 = vunpack.c.l.b16 %v1484
      %v1505 = vunpack.c.l.b16 %v1485
      %v1506 = vunpack.c.l.b16 %v1486
      %v1507 = vunpack.c.l.b16 %v1487
      %v1508 = vunpack.c.l.b16 %v1488
      %v1509 = vpack.c.b16 %v1502, %v1501
      %v1510 = vpack.c.b16 %v1504, %v1503
      %v1511 = vpack.c.b16 %v1506, %v1505
      %v1512 = vpack.c.b16 %v1508, %v1507
      %vm1517 = vcmask 523264
      %v1519 = vsel %vm1517, %v1480, 0
      %1521 = vmatpush.bf16.msra.mxu0 0
      %1522 = vmatpush.bf16.msra.mxu0 0
      %1523 = vmatpush.bf16.msra.mxu0 0
      %1524 = vmatpush.bf16.msra.mxu0 0
      %1525 = vmatpush.bf16.msra.mxu0 %v1512
      %1526 = vmatpush.bf16.msra.mxu0 %v1511
      %1527 = vmatpush.bf16.msra.mxu0 %v1510
      %1528 = vmatpush.bf16.msra.mxu0 %v1509
      %1529 = vmatmul.bf16.gmra.mxu0 %v1519
      %v1530 = vpop.f32.mrf.mxu0
      %v1531 = vadd.f32 %v1491, %v1530
      %v1532 = vpop.f32.mrf.mxu0
      %1533 = vdwg.mxu0
      %v1534 = vadd.f32 %v1531, %v1441
      %v1535 = vsel %vm708, %v1534, 0.0
      %1536 = vadd.xlane.f32.xlu0 %v1535
      %v1537 = vpop.xlane.xlu0 %1536
      %v1538 = vmul.f32 %v1537, %v1029
      %v1539 = vsub.f32 %v1534, %v1538
      %v1540 = vmul.f32 %v1539, %v1539
      %v1541 = vsel %vm708, %v1540, 0.0
      %1542 = vadd.xlane.f32.xlu0 %v1541
      %v1543 = vpop.xlane.xlu0 %1542
      %v1544 = vmul.f32 %v1543, %v1029
      %v1545 = vadd.f32 %v1544, 1e-12
      %v1546 = vrsqrt.pop %v1545
      %v1547 = vmul.f32 %v1546, %v1545
      %v1548 = vmul.f32 %v1547, %v1546
      %v1549 = vmul.f32 0.5, %v1548
      %v1550 = vsub.f32 1.5, %v1549
      %v1551 = vmul.f32 %v1546, %v1550
      %vm1552 = vweird.f32 %v1545
      %vm1553 = vweird.f32 %v1546
      %vm1554 = vmor %vm1552, %vm1553
      %v1555 = vsel %vm1554, %v1546, %v1551
      %v1556 = vmul.f32 %v1539, %v1555
      %v1557 = vperm.slane %v685, 2
      %v1558 = vmul.f32 %v1556, %v1557
      %v1559 = vperm.slane %v686, 2
      %v1560 = vadd.f32 %v1558, %v1559
      %1561 = vst.msk [vmem:[%s675] sm:$0xff] %vm708, %v1560
      %p1562 = scmp.lt.s32.totalorder %s31, 1
      %s1563 = scalar_select %p1562, %s31, 1
      %s1564 = smul.addr %s1563, 8
      %s1565 = scalar_lea.vmem %s20, %s1564
      // Predicated region
      $region101: #{decoder_forward.3} parent=99 // pred_check
        %p1566 = pneg %p489
      $region102: #{decoder_forward.3} parent=99 // pred_check_branch
        %1568 = sbr.rel (%p1566) target = $region104
      $region103: #{decoder_forward.3} parent=99 // pred_region
        _
      $region104: #{decoder_forward.3} parent=99 // pred_fallthru
        _
    $region100: #{decoder_forward.3} parent=5 // pred_fallthru
      _
    %p1569 = scmp.le.s32.totalorder 2, %s26
    // Predicated region
    $region105: #{decoder_forward.3} parent=5 // pred_check
      %p1570 = pneg %p1569
    $region106: #{decoder_forward.3} parent=5 // pred_check_branch
      %1572 = sbr.rel (%p1570) target = $region108
    $region107: #{decoder_forward.3} parent=5 // pred_region
      %s1573 = ssub.s32 %s26, 2
      // Predicated region
      $region109: #{decoder_forward.3} parent=107 // pred_check
        %p1574 = pneg %p495
      $region110: #{decoder_forward.3} parent=107 // pred_check_branch
        %1576 = sbr.rel (%p1574) target = $region112
      $region111: #{decoder_forward.3} parent=107 // pred_region
        %p1577 = scmp.lt.s32.totalorder %s32, 1
        %s1578 = scalar_select %p1577, %s32, 1
        %s1579 = smul.addr %s1578, 8
        %s1580 = scalar_lea.vmem %s20, %s1579
      $region112: #{decoder_forward.3} parent=107 // pred_fallthru
        _
    $region108: #{decoder_forward.3} parent=5 // pred_fallthru
      _
  $region6: #{decoder_forward.3} parent=0 // loop_footer
    %s30 = sadd.s32 1, %s26
  $region7: #{decoder_forward.3} parent=0 // loop_footer_branch
    %25 = sbr.rel target = $region3
  $region8: #{decoder_forward.3} parent=0 // loop_exit
    _

</llo_original>
